<compile_context>
chip_gen: v5e
topology: v5e:2x2
jax: 0.10.0
libtpu: 0.0.40
codegen_flags: <defaults>
</compile_context>

<pallas_src>
from typing import NamedTuple, Tuple

import jax
import jax.numpy as jnp
from jax.experimental import pallas as pl
from jax.experimental.pallas import tpu as pltpu

BN_EPS = 1e-5


# ----------------------------------------------------------------------------- config
class LayerCfg(NamedTuple):
    cin: int
    cout: int
    k: int
    s: int
    p: int
    l_in: int
    l_out: int


class VAEConfig(NamedTuple):
    B: int
    L0: int
    input_channels: int
    latent: int
    seq_cls: int
    enc: Tuple[LayerCfg, ...]
    dec: Tuple[LayerCfg, ...]
    L_rec: int


def make_config(input_channels, encoder_channels, decoder_channels,
                kernel_sizes, strides, paddings, latent_dim, B, L0,
                seq_len_cls=200):
    enc = []
    ins = [input_channels] + list(encoder_channels[:-1])
    L = L0
    for cin, cout, k, s, p in zip(ins, encoder_channels, kernel_sizes, strides, paddings):
        lo = (L + 2 * p - k) // s + 1
        enc.append(LayerCfg(cin, cout, k, s, p, L, lo))
        L = lo
    # fc_mu has in_features == encoder_channels[-1]  =>  conv stack must end at length 1
    assert L == 1, "encoder conv stack must reduce length to 1"

    rk, rs, rp = kernel_sizes[::-1], strides[::-1], paddings[::-1]
    dec = []
    L = 1
    for cin, cout, k, s, p in zip(decoder_channels[:-1], decoder_channels[1:], rk, rs, rp):
        lo = (L - 1) * s - 2 * p + k
        dec.append(LayerCfg(cin, cout, k, s, p, L, lo))
        L = lo
    assert len(dec) >= 1
    L_rec = L  # final ConvTranspose1d(k=3, s=1, p=1) preserves length
    return VAEConfig(B=B, L0=L0, input_channels=input_channels, latent=latent_dim,
                     seq_cls=seq_len_cls, enc=tuple(enc), dec=tuple(dec), L_rec=L_rec)


# ----------------------------------------------------------------------------- kernel
def _make_vae_kernel(cfg: VAEConfig):
    B = cfg.B
    n_enc, n_dec = len(cfg.enc), len(cfg.dec)

    def conv_block(in_ref, w_ref, b_ref, out_ref, lay: LayerCfg):
        # Conv1d + folded BatchNorm1d(eval) + tanh.  Rows = (position, batch).
        bias = b_ref[...]                                     # (1, cout)
        for t_out in range(lay.l_out):
            acc = None
            for j in range(lay.k):
                t_in = t_out * lay.s - lay.p + j
                if 0 <= t_in < lay.l_in:
                    blk = in_ref[pl.ds(t_in * B, B), :]       # (B, cin)
                    wj = w_ref[j]                             # (cin, cout)
                    if lay.cin == 1:
                        contrib = blk * wj                    # outer product via broadcast
                    else:
                        contrib = jnp.dot(blk, wj, preferred_element_type=jnp.float32)
                    acc = contrib if acc is None else acc + contrib
            if acc is None:
                acc = jnp.zeros((B, lay.cout), jnp.float32)
            out_ref[pl.ds(t_out * B, B), :] = jnp.tanh(acc + bias)

    def tconv_block(in_ref, w_ref, b_ref, out_ref, lay: LayerCfg):
        # ConvTranspose1d + folded BatchNorm1d(eval) + tanh.
        nonoverlap = (lay.p == 0 and lay.s == lay.k)
        if not nonoverlap:
            out_ref[...] = jnp.zeros(out_ref.shape, out_ref.dtype)
        for t_in in range(lay.l_in):
            blk = in_ref[pl.ds(t_in * B, B), :]               # (B, cin)
            for j in range(lay.k):
                t_out = t_in * lay.s - lay.p + j
                if not (0 <= t_out < lay.l_out):
                    continue
                wj = w_ref[j]                                 # (cin, cout)
                if lay.cin == 1:
                    contrib = blk * wj
                else:
                    contrib = jnp.dot(blk, wj, preferred_element_type=jnp.float32)
                sl = pl.ds(t_out * B, B)
                if nonoverlap:
                    out_ref[sl, :] = contrib
                else:
                    out_ref[sl, :] = out_ref[sl, :] + contrib
        out_ref[...] = jnp.tanh(out_ref[...] + b_ref[...])

    def kernel(*refs):
        it = iter(refs)
        # ---- inputs -------------------------------------------------------
        x_ref = next(it)
        eps_ref = next(it)
        enc_w = [(next(it), next(it)) for _ in range(n_enc)]
        fc_mu_w, fc_mu_b = next(it), next(it)
        fc_lv_w, fc_lv_b = next(it), next(it)
        bc1_w, bc1_b = next(it), next(it)
        bc2_w, bc2_b = next(it), next(it)
        dfc_w, dfc_b = next(it), next(it)
        dec_w = [(next(it), next(it)) for _ in range(n_dec)]
        fin_w, fin_b = next(it), next(it)
        # ---- outputs ------------------------------------------------------
        recon_ref, bin_ref, mu_ref, lv_ref = next(it), next(it), next(it), next(it)
        # ---- scratch ------------------------------------------------------
        enc_s = [next(it) for _ in range(n_enc)]
        dec0_s = next(it)
        dec_s = [next(it) for _ in range(n_dec)]
        hp_s = next(it)

        # ------------------------------ encoder -----------------------------
        cur = x_ref
        for i, lay in enumerate(cfg.enc):
            conv_block(cur, enc_w[i][0], enc_w[i][1], enc_s[i], lay)
            cur = enc_s[i]
            # TODO(synk): nn.Dropout in training mode not implemented (eval: identity)
        feat = cur[...]                                       # (B, C_last), since length == 1
        mu = jnp.dot(feat, fc_mu_w[...], preferred_element_type=jnp.float32) + fc_mu_b[...]
        logvar = jnp.dot(feat, fc_lv_w[...], preferred_element_type=jnp.float32) + fc_lv_b[...]
        mu_ref[...] = mu
        lv_ref[...] = logvar

        # ------------------------------ reparameterize -----------------------
        z = mu + eps_ref[...] * jnp.exp(0.5 * logvar)

        # ------------------------------ binary classifier --------------------
        bh = jnp.maximum(
            jnp.dot(z, bc1_w[...], preferred_element_type=jnp.float32) + bc1_b[...], 0.0)
        logits = jnp.dot(bh, bc2_w[...], preferred_element_type=jnp.float32) + bc2_b[...]
        bin_ref[...] = jax.nn.sigmoid(logits)

        # ------------------------------ decoder ------------------------------
        dec0_s[...] = jnp.dot(z, dfc_w[...], preferred_element_type=jnp.float32) + dfc_b[...]
        cur = dec0_s
        for i, lay in enumerate(cfg.dec):
            tconv_block(cur, dec_w[i][0], dec_w[i][1], dec_s[i], lay)
            cur = dec_s[i]

        # final ConvTranspose1d(k=3, s=1, p=1): 3 shifted taps over zero-padded rows.
        # out(t) = bias + sum_j x(t + 1 - j) . W[:, :, j]    (output_channels == 1)
        L, c_last = cfg.L_rec, cfg.dec[-1].cout
        hp_s[...] = jnp.zeros(hp_s.shape, hp_s.dtype)
        hp_s[pl.ds(B, L * B), :] = cur[...]
        out = fin_b[...]                                      # (1, 1) -> broadcast
        for j in range(3):
            wrow = fin_w[j]                                   # (1, c_last)
            window = hp_s[pl.ds((2 - j) * B, L * B), :]       # (L*B, c_last)
            out = out + jnp.sum(window * wrow, axis=1, keepdims=True)
        recon_ref[...] = out                                  # rows = (position, batch)

    return kernel


# ----------------------------------------------------------------------------- wrapper
def make_vae_forward(cfg: VAEConfig):
    kernel = _make_vae_kernel(cfg)
    B, L0, latent, seq_cls, L_rec = cfg.B, cfg.L0, cfg.latent, cfg.seq_cls, cfg.L_rec

    vmem = pl.BlockSpec(memory_space=pltpu.MemorySpace.VMEM)
    scratch_shapes = (
        [pltpu.VMEM((lay.l_out * B, lay.cout), jnp.float32) for lay in cfg.enc]
        + [pltpu.VMEM((B, cfg.dec[0].cin), jnp.float32)]                       # decoder fc out
        + [pltpu.VMEM((lay.l_out * B, lay.cout), jnp.float32) for lay in cfg.dec]
        + [pltpu.VMEM(((L_rec + 2) * B, cfg.dec[-1].cout), jnp.float32)]       # padded final-conv input
    )
    out_shape = (
        jax.ShapeDtypeStruct((L_rec * B, 1), jnp.float32),   # recon, rows = (t, b)
        jax.ShapeDtypeStruct((B, seq_cls), jnp.float32),     # binary_pred
        jax.ShapeDtypeStruct((B, latent), jnp.float32),      # mu
        jax.ShapeDtypeStruct((B, latent), jnp.float32),      # logvar
    )

    @jax.jit
    def forward(params, x, eps):
        assert x.shape == (B, cfg.input_channels, L0)
        # (B, C, L) -> rows (position, batch), channels in lanes: one tiny input-side relayout.
        x_rows = jnp.transpose(x.astype(jnp.float32), (2, 0, 1)).reshape(L0 * B, cfg.input_channels)

        inputs = [x_rows, eps.astype(jnp.float32)]
        for w3, b in params["enc"]:
            inputs += [w3, b]
        inputs += [params["fc_mu_w"], params["fc_mu_b"],
                   params["fc_logvar_w"], params["fc_logvar_b"],
                   params["bc1_w"], params["bc1_b"],
                   params["bc2_w"], params["bc2_b"],
                   params["dec_fc_w"], params["dec_fc_b"]]
        for w3, b in params["dec"]:
            inputs += [w3, b]
        inputs += [params["final_w"], params["final_b"]]

        recon_col, binary_pred, mu, logvar = pl.pallas_call(
            kernel,
            out_shape=out_shape,
            in_specs=[vmem] * len(inputs),
            out_specs=(vmem, vmem, vmem, vmem),
            scratch_shapes=scratch_shapes,
        )(*inputs)

        recon_x = recon_col.reshape(L_rec, B).transpose(1, 0)[:, None, :]   # (B, 1, L)
        return recon_x, binary_pred, mu, logvar

    return forward


# ----------------------------------------------------------------------------- params
def init_raw_params(key, cfg: VAEConfig):
    """Raw parameters with exactly the PyTorch module's shapes / conventions."""
    keys = iter(jax.random.split(key, 128))
    nrm = lambda shape, s=0.1: (s * jax.random.normal(next(keys), shape)).astype(jnp.float32)

    raw = {"enc": [], "dec": []}
    for lay in cfg.enc:
        raw["enc"].append(dict(
            w=nrm((lay.cout, lay.cin, lay.k)), b=nrm((lay.cout,)),
            gamma=jnp.ones((lay.cout,), jnp.float32), beta=jnp.zeros((lay.cout,), jnp.float32),
            running_mean=jnp.zeros((lay.cout,), jnp.float32),
            running_var=jnp.ones((lay.cout,), jnp.float32)))
    c_last = cfg.enc[-1].cout
    raw["fc_mu_w"] = nrm((cfg.latent, c_last));        raw["fc_mu_b"] = nrm((cfg.latent,))
    raw["fc_logvar_w"] = nrm((cfg.latent, c_last));    raw["fc_logvar_b"] = nrm((cfg.latent,))
    raw["bc1_w"] = nrm((2 * cfg.latent, cfg.latent));  raw["bc1_b"] = nrm((2 * cfg.latent,))
    raw["bc2_w"] = nrm((cfg.seq_cls, 2 * cfg.latent)); raw["bc2_b"] = nrm((cfg.seq_cls,))
    raw["dec_fc_w"] = nrm((cfg.dec[0].cin, cfg.latent))
    raw["dec_fc_b"] = nrm((cfg.dec[0].cin,))
    for lay in cfg.dec:
        raw["dec"].append(dict(
            w=nrm((lay.cin, lay.cout, lay.k)), b=nrm((lay.cout,)),
            gamma=jnp.ones((lay.cout,), jnp.float32), beta=jnp.zeros((lay.cout,), jnp.float32),
            running_mean=jnp.zeros((lay.cout,), jnp.float32),
            running_var=jnp.ones((lay.cout,), jnp.float32)))
    raw["final_w"] = nrm((cfg.dec[-1].cout, 1, 3))
    raw["final_b"] = nrm((1,))
    return raw


def prepare_params(raw, cfg: VAEConfig):
    """One-time prep: fold eval-mode BatchNorm into conv weight/bias and pre-transpose
    all weights into the kernel layouts (conv: (K, C_in, C_out), linear: (in, out))."""
    def bn_fold(blk):
        scale = blk["gamma"] / jnp.sqrt(blk["running_var"] + BN_EPS)
        shift = blk["beta"] - blk["running_mean"] * scale
        return scale, (blk["b"] * scale + shift)

    p = {"enc": [], "dec": []}
    for blk in raw["enc"]:      # Conv1d weight (Cout, Cin, K) -> (K, Cin, Cout)
        scale, bias = bn_fold(blk)
        w3 = jnp.transpose(blk["w"], (2, 1, 0)) * scale[None, None, :]
        p["enc"].append((w3.astype(jnp.float32), bias.reshape(1, -1).astype(jnp.float32)))
    for blk in raw["dec"]:      # ConvTranspose1d weight (Cin, Cout, K) -> (K, Cin, Cout)
        scale, bias = bn_fold(blk)
        w3 = jnp.transpose(blk["w"], (2, 0, 1)) * scale[None, None, :]
        p["dec"].append((w3.astype(jnp.float32), bias.reshape(1, -1).astype(jnp.float32)))

    lin = lambda w, b: (jnp.asarray(w, jnp.float32).T,
                        jnp.asarray(b, jnp.float32).reshape(1, -1))
    p["fc_mu_w"], p["fc_mu_b"] = lin(raw["fc_mu_w"], raw["fc_mu_b"])
    p["fc_logvar_w"], p["fc_logvar_b"] = lin(raw["fc_logvar_w"], raw["fc_logvar_b"])
    p["bc1_w"], p["bc1_b"] = lin(raw["bc1_w"], raw["bc1_b"])
    p["bc2_w"], p["bc2_b"] = lin(raw["bc2_w"], raw["bc2_b"])
    p["dec_fc_w"], p["dec_fc_b"] = lin(raw["dec_fc_w"], raw["dec_fc_b"])
    # final ConvTranspose1d weight (Cin, 1, 3) -> per-tap rows (3, 1, Cin)
    p["final_w"] = jnp.transpose(raw["final_w"], (2, 1, 0)).astype(jnp.float32)
    p["final_b"] = raw["final_b"].reshape(1, 1).astype(jnp.float32)
    return p


# ----------------------------------------------------------------------------- main
if __name__ == "__main__":
    # Small config: encoder reduces length 16 -> 4 -> 1 so the flatten matches fc_mu,
    # exactly as required by the PyTorch module.
    input_channels = 1
    encoder_channels = [8, 16]
    decoder_channels = [16, 8, 4]
    kernel_sizes = [4, 4]
    strides = [4, 4]
    paddings = [0, 0]
    latent_dim = 8
    B, L = 2, 16

    cfg = make_config(input_channels, encoder_channels, decoder_channels,
                      kernel_sizes, strides, paddings, latent_dim, B, L)

    root = jax.random.PRNGKey(0)
    kp, kx, ke = jax.random.split(root, 3)
    raw_params = init_raw_params(kp, cfg)
    params = prepare_params(raw_params, cfg)        # one-time BN fold + weight relayout
    forward = make_vae_forward(cfg)

    x = jax.random.normal(kx, (B, input_channels, L), dtype=jnp.float32)
    eps = jax.random.normal(ke, (B, latent_dim), dtype=jnp.float32)

    recon_x, binary_pred, mu, logvar = forward(params, x, eps)
    jax.block_until_ready((recon_x, binary_pred, mu, logvar))

    assert recon_x.shape == (B, 1, L)
    assert binary_pred.shape == (B, 200)
    assert mu.shape == (B, latent_dim) and logvar.shape == (B, latent_dim)
    assert bool(jnp.all(jnp.isfinite(recon_x))) and bool(jnp.all(jnp.isfinite(binary_pred)))
    print("KERNEL_OK")
</pallas_src>

<mosaic_0001>
module attributes {stable_mosaic.version = 11 : i64} {
  func.func @kernel(%arg0: memref<32x1xf32, #tpu.memory_space<vmem>>, %arg1: memref<2x8xf32, #tpu.memory_space<vmem>>, %arg2: memref<4x1x8xf32, #tpu.memory_space<vmem>>, %arg3: memref<1x8xf32, #tpu.memory_space<vmem>>, %arg4: memref<4x8x16xf32, #tpu.memory_space<vmem>>, %arg5: memref<1x16xf32, #tpu.memory_space<vmem>>, %arg6: memref<16x8xf32, #tpu.memory_space<vmem>>, %arg7: memref<1x8xf32, #tpu.memory_space<vmem>>, %arg8: memref<16x8xf32, #tpu.memory_space<vmem>>, %arg9: memref<1x8xf32, #tpu.memory_space<vmem>>, %arg10: memref<8x16xf32, #tpu.memory_space<vmem>>, %arg11: memref<1x16xf32, #tpu.memory_space<vmem>>, %arg12: memref<16x200xf32, #tpu.memory_space<vmem>>, %arg13: memref<1x200xf32, #tpu.memory_space<vmem>>, %arg14: memref<8x16xf32, #tpu.memory_space<vmem>>, %arg15: memref<1x16xf32, #tpu.memory_space<vmem>>, %arg16: memref<4x16x8xf32, #tpu.memory_space<vmem>>, %arg17: memref<1x8xf32, #tpu.memory_space<vmem>>, %arg18: memref<4x8x4xf32, #tpu.memory_space<vmem>>, %arg19: memref<1x4xf32, #tpu.memory_space<vmem>>, %arg20: memref<3x1x4xf32, #tpu.memory_space<vmem>>, %arg21: memref<1x1xf32, #tpu.memory_space<vmem>>, %arg22: memref<32x1xf32, #tpu.memory_space<vmem>>, %arg23: memref<2x200xf32, #tpu.memory_space<vmem>>, %arg24: memref<2x8xf32, #tpu.memory_space<vmem>>, %arg25: memref<2x8xf32, #tpu.memory_space<vmem>>, %arg26: memref<8x8xf32, #tpu.memory_space<vmem>>, %arg27: memref<2x16xf32, #tpu.memory_space<vmem>>, %arg28: memref<2x16xf32, #tpu.memory_space<vmem>>, %arg29: memref<8x8xf32, #tpu.memory_space<vmem>>, %arg30: memref<32x4xf32, #tpu.memory_space<vmem>>, %arg31: memref<36x4xf32, #tpu.memory_space<vmem>>) attributes {dimension_semantics = [], scalar_prefetch = 0 : i64, scratch_operands = 6 : i64, tpu.core_type = #tpu.core_type<tc>} {
    %c0 = arith.constant 0 : index
    %c0_0 = arith.constant 0 : index
    %0 = vector.load %arg3[%c0, %c0_0] : memref<1x8xf32, #tpu.memory_space<vmem>>, vector<1x8xf32>
    %c0_1 = arith.constant 0 : index
    %c0_2 = arith.constant 0 : index
    %1 = vector.load %arg0[%c0_1, %c0_2] : memref<32x1xf32, #tpu.memory_space<vmem>>, vector<2x1xf32>
    %c0_3 = arith.constant 0 : index
    %c0_4 = arith.constant 0 : index
    %c0_5 = arith.constant 0 : index
    %2 = vector.load %arg2[%c0_3, %c0_4, %c0_5] : memref<4x1x8xf32, #tpu.memory_space<vmem>>, vector<1x1x8xf32>
    %3 = vector.shape_cast %2 : vector<1x1x8xf32> to vector<1x8xf32>
    %4 = vector.broadcast %1 : vector<2x1xf32> to vector<2x8xf32>
    %5 = vector.broadcast %3 : vector<1x8xf32> to vector<2x8xf32>
    %6 = arith.mulf %4, %5 : vector<2x8xf32>
    %c2 = arith.constant 2 : index
    %c0_6 = arith.constant 0 : index
    %7 = vector.load %arg0[%c2, %c0_6] : memref<32x1xf32, #tpu.memory_space<vmem>>, vector<2x1xf32>
    %c1 = arith.constant 1 : index
    %c0_7 = arith.constant 0 : index
    %c0_8 = arith.constant 0 : index
    %8 = vector.load %arg2[%c1, %c0_7, %c0_8] : memref<4x1x8xf32, #tpu.memory_space<vmem>>, vector<1x1x8xf32>
    %9 = vector.shape_cast %8 : vector<1x1x8xf32> to vector<1x8xf32>
    %10 = vector.broadcast %7 : vector<2x1xf32> to vector<2x8xf32>
    %11 = vector.broadcast %9 : vector<1x8xf32> to vector<2x8xf32>
    %12 = arith.mulf %10, %11 : vector<2x8xf32>
    %13 = arith.addf %6, %12 : vector<2x8xf32>
    %c4 = arith.constant 4 : index
    %c0_9 = arith.constant 0 : index
    %14 = vector.load %arg0[%c4, %c0_9] : memref<32x1xf32, #tpu.memory_space<vmem>>, vector<2x1xf32>
    %c2_10 = arith.constant 2 : index
    %c0_11 = arith.constant 0 : index
    %c0_12 = arith.constant 0 : index
    %15 = vector.load %arg2[%c2_10, %c0_11, %c0_12] : memref<4x1x8xf32, #tpu.memory_space<vmem>>, vector<1x1x8xf32>
    %16 = vector.shape_cast %15 : vector<1x1x8xf32> to vector<1x8xf32>
    %17 = vector.broadcast %14 : vector<2x1xf32> to vector<2x8xf32>
    %18 = vector.broadcast %16 : vector<1x8xf32> to vector<2x8xf32>
    %19 = arith.mulf %17, %18 : vector<2x8xf32>
    %20 = arith.addf %13, %19 : vector<2x8xf32>
    %c6 = arith.constant 6 : index
    %c0_13 = arith.constant 0 : index
    %21 = vector.load %arg0[%c6, %c0_13] : memref<32x1xf32, #tpu.memory_space<vmem>>, vector<2x1xf32>
    %c3 = arith.constant 3 : index
    %c0_14 = arith.constant 0 : index
    %c0_15 = arith.constant 0 : index
    %22 = vector.load %arg2[%c3, %c0_14, %c0_15] : memref<4x1x8xf32, #tpu.memory_space<vmem>>, vector<1x1x8xf32>
    %23 = vector.shape_cast %22 : vector<1x1x8xf32> to vector<1x8xf32>
    %24 = vector.broadcast %21 : vector<2x1xf32> to vector<2x8xf32>
    %25 = vector.broadcast %23 : vector<1x8xf32> to vector<2x8xf32>
    %26 = arith.mulf %24, %25 : vector<2x8xf32>
    %27 = arith.addf %20, %26 : vector<2x8xf32>
    %28 = vector.broadcast %0 : vector<1x8xf32> to vector<2x8xf32>
    %29 = arith.addf %27, %28 : vector<2x8xf32>
    %30 = math.tanh %29 : vector<2x8xf32>
    %c0_16 = arith.constant 0 : index
    %c0_17 = arith.constant 0 : index
    %31 = vector.load %arg26[%c0_16, %c0_17] : memref<8x8xf32, #tpu.memory_space<vmem>>, vector<2x8xf32>
    tpu.vector_store %arg26[%c0_16, %c0_17], %30 {strides = array<i32>} : memref<8x8xf32, #tpu.memory_space<vmem>>, vector<2x8xf32>,
    %c8 = arith.constant 8 : index
    %c0_18 = arith.constant 0 : index
    %32 = vector.load %arg0[%c8, %c0_18] : memref<32x1xf32, #tpu.memory_space<vmem>>, vector<2x1xf32>
    %c0_19 = arith.constant 0 : index
    %c0_20 = arith.constant 0 : index
    %c0_21 = arith.constant 0 : index
    %33 = vector.load %arg2[%c0_19, %c0_20, %c0_21] : memref<4x1x8xf32, #tpu.memory_space<vmem>>, vector<1x1x8xf32>
    %34 = vector.shape_cast %33 : vector<1x1x8xf32> to vector<1x8xf32>
    %35 = vector.broadcast %32 : vector<2x1xf32> to vector<2x8xf32>
    %36 = vector.broadcast %34 : vector<1x8xf32> to vector<2x8xf32>
    %37 = arith.mulf %35, %36 : vector<2x8xf32>
    %c10 = arith.constant 10 : index
    %c0_22 = arith.constant 0 : index
    %38 = vector.load %arg0[%c10, %c0_22] : memref<32x1xf32, #tpu.memory_space<vmem>>, vector<2x1xf32>
    %c1_23 = arith.constant 1 : index
    %c0_24 = arith.constant 0 : index
    %c0_25 = arith.constant 0 : index
    %39 = vector.load %arg2[%c1_23, %c0_24, %c0_25] : memref<4x1x8xf32, #tpu.memory_space<vmem>>, vector<1x1x8xf32>
    %40 = vector.shape_cast %39 : vector<1x1x8xf32> to vector<1x8xf32>
    %41 = vector.broadcast %38 : vector<2x1xf32> to vector<2x8xf32>
    %42 = vector.broadcast %40 : vector<1x8xf32> to vector<2x8xf32>
    %43 = arith.mulf %41, %42 : vector<2x8xf32>
    %44 = arith.addf %37, %43 : vector<2x8xf32>
    %c12 = arith.constant 12 : index
    %c0_26 = arith.constant 0 : index
    %45 = vector.load %arg0[%c12, %c0_26] : memref<32x1xf32, #tpu.memory_space<vmem>>, vector<2x1xf32>
    %c2_27 = arith.constant 2 : index
    %c0_28 = arith.constant 0 : index
    %c0_29 = arith.constant 0 : index
    %46 = vector.load %arg2[%c2_27, %c0_28, %c0_29] : memref<4x1x8xf32, #tpu.memory_space<vmem>>, vector<1x1x8xf32>
    %47 = vector.shape_cast %46 : vector<1x1x8xf32> to vector<1x8xf32>
    %48 = vector.broadcast %45 : vector<2x1xf32> to vector<2x8xf32>
    %49 = vector.broadcast %47 : vector<1x8xf32> to vector<2x8xf32>
    %50 = arith.mulf %48, %49 : vector<2x8xf32>
    %51 = arith.addf %44, %50 : vector<2x8xf32>
    %c14 = arith.constant 14 : index
    %c0_30 = arith.constant 0 : index
    %52 = vector.load %arg0[%c14, %c0_30] : memref<32x1xf32, #tpu.memory_space<vmem>>, vector<2x1xf32>
    %c3_31 = arith.constant 3 : index
    %c0_32 = arith.constant 0 : index
    %c0_33 = arith.constant 0 : index
    %53 = vector.load %arg2[%c3_31, %c0_32, %c0_33] : memref<4x1x8xf32, #tpu.memory_space<vmem>>, vector<1x1x8xf32>
    %54 = vector.shape_cast %53 : vector<1x1x8xf32> to vector<1x8xf32>
    %55 = vector.broadcast %52 : vector<2x1xf32> to vector<2x8xf32>
    %56 = vector.broadcast %54 : vector<1x8xf32> to vector<2x8xf32>
    %57 = arith.mulf %55, %56 : vector<2x8xf32>
    %58 = arith.addf %51, %57 : vector<2x8xf32>
    %59 = vector.broadcast %0 : vector<1x8xf32> to vector<2x8xf32>
    %60 = arith.addf %58, %59 : vector<2x8xf32>
    %61 = math.tanh %60 : vector<2x8xf32>
    %c2_34 = arith.constant 2 : index
    %c0_35 = arith.constant 0 : index
    %62 = vector.load %arg26[%c2_34, %c0_35] : memref<8x8xf32, #tpu.memory_space<vmem>>, vector<2x8xf32>
    tpu.vector_store %arg26[%c2_34, %c0_35], %61 {strides = array<i32>} : memref<8x8xf32, #tpu.memory_space<vmem>>, vector<2x8xf32>,
    %c16 = arith.constant 16 : index
    %c0_36 = arith.constant 0 : index
    %63 = vector.load %arg0[%c16, %c0_36] : memref<32x1xf32, #tpu.memory_space<vmem>>, vector<2x1xf32>
    %c0_37 = arith.constant 0 : index
    %c0_38 = arith.constant 0 : index
    %c0_39 = arith.constant 0 : index
    %64 = vector.load %arg2[%c0_37, %c0_38, %c0_39] : memref<4x1x8xf32, #tpu.memory_space<vmem>>, vector<1x1x8xf32>
    %65 = vector.shape_cast %64 : vector<1x1x8xf32> to vector<1x8xf32>
    %66 = vector.broadcast %63 : vector<2x1xf32> to vector<2x8xf32>
    %67 = vector.broadcast %65 : vector<1x8xf32> to vector<2x8xf32>
    %68 = arith.mulf %66, %67 : vector<2x8xf32>
    %c18 = arith.constant 18 : index
    %c0_40 = arith.constant 0 : index
    %69 = vector.load %arg0[%c18, %c0_40] : memref<32x1xf32, #tpu.memory_space<vmem>>, vector<2x1xf32>
    %c1_41 = arith.constant 1 : index
    %c0_42 = arith.constant 0 : index
    %c0_43 = arith.constant 0 : index
    %70 = vector.load %arg2[%c1_41, %c0_42, %c0_43] : memref<4x1x8xf32, #tpu.memory_space<vmem>>, vector<1x1x8xf32>
    %71 = vector.shape_cast %70 : vector<1x1x8xf32> to vector<1x8xf32>
    %72 = vector.broadcast %69 : vector<2x1xf32> to vector<2x8xf32>
    %73 = vector.broadcast %71 : vector<1x8xf32> to vector<2x8xf32>
    %74 = arith.mulf %72, %73 : vector<2x8xf32>
    %75 = arith.addf %68, %74 : vector<2x8xf32>
    %c20 = arith.constant 20 : index
    %c0_44 = arith.constant 0 : index
    %76 = vector.load %arg0[%c20, %c0_44] : memref<32x1xf32, #tpu.memory_space<vmem>>, vector<2x1xf32>
    %c2_45 = arith.constant 2 : index
    %c0_46 = arith.constant 0 : index
    %c0_47 = arith.constant 0 : index
    %77 = vector.load %arg2[%c2_45, %c0_46, %c0_47] : memref<4x1x8xf32, #tpu.memory_space<vmem>>, vector<1x1x8xf32>
    %78 = vector.shape_cast %77 : vector<1x1x8xf32> to vector<1x8xf32>
    %79 = vector.broadcast %76 : vector<2x1xf32> to vector<2x8xf32>
    %80 = vector.broadcast %78 : vector<1x8xf32> to vector<2x8xf32>
    %81 = arith.mulf %79, %80 : vector<2x8xf32>
    %82 = arith.addf %75, %81 : vector<2x8xf32>
    %c22 = arith.constant 22 : index
    %c0_48 = arith.constant 0 : index
    %83 = vector.load %arg0[%c22, %c0_48] : memref<32x1xf32, #tpu.memory_space<vmem>>, vector<2x1xf32>
    %c3_49 = arith.constant 3 : index
    %c0_50 = arith.constant 0 : index
    %c0_51 = arith.constant 0 : index
    %84 = vector.load %arg2[%c3_49, %c0_50, %c0_51] : memref<4x1x8xf32, #tpu.memory_space<vmem>>, vector<1x1x8xf32>
    %85 = vector.shape_cast %84 : vector<1x1x8xf32> to vector<1x8xf32>
    %86 = vector.broadcast %83 : vector<2x1xf32> to vector<2x8xf32>
    %87 = vector.broadcast %85 : vector<1x8xf32> to vector<2x8xf32>
    %88 = arith.mulf %86, %87 : vector<2x8xf32>
    %89 = arith.addf %82, %88 : vector<2x8xf32>
    %90 = vector.broadcast %0 : vector<1x8xf32> to vector<2x8xf32>
    %91 = arith.addf %89, %90 : vector<2x8xf32>
    %92 = math.tanh %91 : vector<2x8xf32>
    %c4_52 = arith.constant 4 : index
    %c0_53 = arith.constant 0 : index
    %93 = vector.load %arg26[%c4_52, %c0_53] : memref<8x8xf32, #tpu.memory_space<vmem>>, vector<2x8xf32>
    tpu.vector_store %arg26[%c4_52, %c0_53], %92 {strides = array<i32>} : memref<8x8xf32, #tpu.memory_space<vmem>>, vector<2x8xf32>,
    %c24 = arith.constant 24 : index
    %c0_54 = arith.constant 0 : index
    %94 = vector.load %arg0[%c24, %c0_54] : memref<32x1xf32, #tpu.memory_space<vmem>>, vector<2x1xf32>
    %c0_55 = arith.constant 0 : index
    %c0_56 = arith.constant 0 : index
    %c0_57 = arith.constant 0 : index
    %95 = vector.load %arg2[%c0_55, %c0_56, %c0_57] : memref<4x1x8xf32, #tpu.memory_space<vmem>>, vector<1x1x8xf32>
    %96 = vector.shape_cast %95 : vector<1x1x8xf32> to vector<1x8xf32>
    %97 = vector.broadcast %94 : vector<2x1xf32> to vector<2x8xf32>
    %98 = vector.broadcast %96 : vector<1x8xf32> to vector<2x8xf32>
    %99 = arith.mulf %97, %98 : vector<2x8xf32>
    %c26 = arith.constant 26 : index
    %c0_58 = arith.constant 0 : index
    %100 = vector.load %arg0[%c26, %c0_58] : memref<32x1xf32, #tpu.memory_space<vmem>>, vector<2x1xf32>
    %c1_59 = arith.constant 1 : index
    %c0_60 = arith.constant 0 : index
    %c0_61 = arith.constant 0 : index
    %101 = vector.load %arg2[%c1_59, %c0_60, %c0_61] : memref<4x1x8xf32, #tpu.memory_space<vmem>>, vector<1x1x8xf32>
    %102 = vector.shape_cast %101 : vector<1x1x8xf32> to vector<1x8xf32>
    %103 = vector.broadcast %100 : vector<2x1xf32> to vector<2x8xf32>
    %104 = vector.broadcast %102 : vector<1x8xf32> to vector<2x8xf32>
    %105 = arith.mulf %103, %104 : vector<2x8xf32>
    %106 = arith.addf %99, %105 : vector<2x8xf32>
    %c28 = arith.constant 28 : index
    %c0_62 = arith.constant 0 : index
    %107 = vector.load %arg0[%c28, %c0_62] : memref<32x1xf32, #tpu.memory_space<vmem>>, vector<2x1xf32>
    %c2_63 = arith.constant 2 : index
    %c0_64 = arith.constant 0 : index
    %c0_65 = arith.constant 0 : index
    %108 = vector.load %arg2[%c2_63, %c0_64, %c0_65] : memref<4x1x8xf32, #tpu.memory_space<vmem>>, vector<1x1x8xf32>
    %109 = vector.shape_cast %108 : vector<1x1x8xf32> to vector<1x8xf32>
    %110 = vector.broadcast %107 : vector<2x1xf32> to vector<2x8xf32>
    %111 = vector.broadcast %109 : vector<1x8xf32> to vector<2x8xf32>
    %112 = arith.mulf %110, %111 : vector<2x8xf32>
    %113 = arith.addf %106, %112 : vector<2x8xf32>
    %c30 = arith.constant 30 : index
    %c0_66 = arith.constant 0 : index
    %114 = vector.load %arg0[%c30, %c0_66] : memref<32x1xf32, #tpu.memory_space<vmem>>, vector<2x1xf32>
    %c3_67 = arith.constant 3 : index
    %c0_68 = arith.constant 0 : index
    %c0_69 = arith.constant 0 : index
    %115 = vector.load %arg2[%c3_67, %c0_68, %c0_69] : memref<4x1x8xf32, #tpu.memory_space<vmem>>, vector<1x1x8xf32>
    %116 = vector.shape_cast %115 : vector<1x1x8xf32> to vector<1x8xf32>
    %117 = vector.broadcast %114 : vector<2x1xf32> to vector<2x8xf32>
    %118 = vector.broadcast %116 : vector<1x8xf32> to vector<2x8xf32>
    %119 = arith.mulf %117, %118 : vector<2x8xf32>
    %120 = arith.addf %113, %119 : vector<2x8xf32>
    %121 = vector.broadcast %0 : vector<1x8xf32> to vector<2x8xf32>
    %122 = arith.addf %120, %121 : vector<2x8xf32>
    %123 = math.tanh %122 : vector<2x8xf32>
    %c6_70 = arith.constant 6 : index
    %c0_71 = arith.constant 0 : index
    %124 = vector.load %arg26[%c6_70, %c0_71] : memref<8x8xf32, #tpu.memory_space<vmem>>, vector<2x8xf32>
    tpu.vector_store %arg26[%c6_70, %c0_71], %123 {strides = array<i32>} : memref<8x8xf32, #tpu.memory_space<vmem>>, vector<2x8xf32>,
    %c0_72 = arith.constant 0 : index
    %c0_73 = arith.constant 0 : index
    %125 = vector.load %arg5[%c0_72, %c0_73] : memref<1x16xf32, #tpu.memory_space<vmem>>, vector<1x16xf32>
    %c0_74 = arith.constant 0 : index
    %c0_75 = arith.constant 0 : index
    %126 = vector.load %arg26[%c0_74, %c0_75] : memref<8x8xf32, #tpu.memory_space<vmem>>, vector<2x8xf32>
    %c0_76 = arith.constant 0 : index
    %c0_77 = arith.constant 0 : index
    %c0_78 = arith.constant 0 : index
    %127 = vector.load %arg4[%c0_76, %c0_77, %c0_78] : memref<4x8x16xf32, #tpu.memory_space<vmem>>, vector<1x8x16xf32>
    %128 = vector.shape_cast %127 : vector<1x8x16xf32> to vector<8x16xf32>
    %cst = arith.constant dense<0.000000e+00> : vector<2x16xf32>
    %129 = tpu.matmul %126, %128, %cst {dimension_numbers = #tpu.dot_dimension_numbers<[1], [0], [0], [1], [0, 0, 1, 1], [], []>} : vector<2x8xf32>, vector<8x16xf32>, vector<2x16xf32> -> vector<2x16xf32>
    %c2_79 = arith.constant 2 : index
    %c0_80 = arith.constant 0 : index
    %130 = vector.load %arg26[%c2_79, %c0_80] : memref<8x8xf32, #tpu.memory_space<vmem>>, vector<2x8xf32>
    %c1_81 = arith.constant 1 : index
    %c0_82 = arith.constant 0 : index
    %c0_83 = arith.constant 0 : index
    %131 = vector.load %arg4[%c1_81, %c0_82, %c0_83] : memref<4x8x16xf32, #tpu.memory_space<vmem>>, vector<1x8x16xf32>
    %132 = vector.shape_cast %131 : vector<1x8x16xf32> to vector<8x16xf32>
    %cst_84 = arith.constant dense<0.000000e+00> : vector<2x16xf32>
    %133 = tpu.matmul %130, %132, %cst_84 {dimension_numbers = #tpu.dot_dimension_numbers<[1], [0], [0], [1], [0, 0, 1, 1], [], []>} : vector<2x8xf32>, vector<8x16xf32>, vector<2x16xf32> -> vector<2x16xf32>
    %134 = arith.addf %129, %133 : vector<2x16xf32>
    %c4_85 = arith.constant 4 : index
    %c0_86 = arith.constant 0 : index
    %135 = vector.load %arg26[%c4_85, %c0_86] : memref<8x8xf32, #tpu.memory_space<vmem>>, vector<2x8xf32>
    %c2_87 = arith.constant 2 : index
    %c0_88 = arith.constant 0 : index
    %c0_89 = arith.constant 0 : index
    %136 = vector.load %arg4[%c2_87, %c0_88, %c0_89] : memref<4x8x16xf32, #tpu.memory_space<vmem>>, vector<1x8x16xf32>
    %137 = vector.shape_cast %136 : vector<1x8x16xf32> to vector<8x16xf32>
    %cst_90 = arith.constant dense<0.000000e+00> : vector<2x16xf32>
    %138 = tpu.matmul %135, %137, %cst_90 {dimension_numbers = #tpu.dot_dimension_numbers<[1], [0], [0], [1], [0, 0, 1, 1], [], []>} : vector<2x8xf32>, vector<8x16xf32>, vector<2x16xf32> -> vector<2x16xf32>
    %139 = arith.addf %134, %138 : vector<2x16xf32>
    %c6_91 = arith.constant 6 : index
    %c0_92 = arith.constant 0 : index
    %140 = vector.load %arg26[%c6_91, %c0_92] : memref<8x8xf32, #tpu.memory_space<vmem>>, vector<2x8xf32>
    %c3_93 = arith.constant 3 : index
    %c0_94 = arith.constant 0 : index
    %c0_95 = arith.constant 0 : index
    %141 = vector.load %arg4[%c3_93, %c0_94, %c0_95] : memref<4x8x16xf32, #tpu.memory_space<vmem>>, vector<1x8x16xf32>
    %142 = vector.shape_cast %141 : vector<1x8x16xf32> to vector<8x16xf32>
    %cst_96 = arith.constant dense<0.000000e+00> : vector<2x16xf32>
    %143 = tpu.matmul %140, %142, %cst_96 {dimension_numbers = #tpu.dot_dimension_numbers<[1], [0], [0], [1], [0, 0, 1, 1], [], []>} : vector<2x8xf32>, vector<8x16xf32>, vector<2x16xf32> -> vector<2x16xf32>
    %144 = arith.addf %139, %143 : vector<2x16xf32>
    %145 = vector.broadcast %125 : vector<1x16xf32> to vector<2x16xf32>
    %146 = arith.addf %144, %145 : vector<2x16xf32>
    %147 = math.tanh %146 : vector<2x16xf32>
    %c0_97 = arith.constant 0 : index
    %c0_98 = arith.constant 0 : index
    %148 = vector.load %arg27[%c0_97, %c0_98] : memref<2x16xf32, #tpu.memory_space<vmem>>, vector<2x16xf32>
    tpu.vector_store %arg27[%c0_97, %c0_98], %147 {strides = array<i32>} : memref<2x16xf32, #tpu.memory_space<vmem>>, vector<2x16xf32>,
    %c0_99 = arith.constant 0 : index
    %c0_100 = arith.constant 0 : index
    %149 = vector.load %arg27[%c0_99, %c0_100] : memref<2x16xf32, #tpu.memory_space<vmem>>, vector<2x16xf32>
    %c0_101 = arith.constant 0 : index
    %c0_102 = arith.constant 0 : index
    %150 = vector.load %arg6[%c0_101, %c0_102] : memref<16x8xf32, #tpu.memory_space<vmem>>, vector<16x8xf32>
    %cst_103 = arith.constant dense<0.000000e+00> : vector<2x8xf32>
    %151 = tpu.matmul %149, %150, %cst_103 {dimension_numbers = #tpu.dot_dimension_numbers<[1], [0], [0], [1], [0, 0, 1, 1], [], []>} : vector<2x16xf32>, vector<16x8xf32>, vector<2x8xf32> -> vector<2x8xf32>
    %c0_104 = arith.constant 0 : index
    %c0_105 = arith.constant 0 : index
    %152 = vector.load %arg7[%c0_104, %c0_105] : memref<1x8xf32, #tpu.memory_space<vmem>>, vector<1x8xf32>
    %153 = vector.broadcast %152 : vector<1x8xf32> to vector<2x8xf32>
    %154 = arith.addf %151, %153 : vector<2x8xf32>
    %c0_106 = arith.constant 0 : index
    %c0_107 = arith.constant 0 : index
    %155 = vector.load %arg8[%c0_106, %c0_107] : memref<16x8xf32, #tpu.memory_space<vmem>>, vector<16x8xf32>
    %cst_108 = arith.constant dense<0.000000e+00> : vector<2x8xf32>
    %156 = tpu.matmul %149, %155, %cst_108 {dimension_numbers = #tpu.dot_dimension_numbers<[1], [0], [0], [1], [0, 0, 1, 1], [], []>} : vector<2x16xf32>, vector<16x8xf32>, vector<2x8xf32> -> vector<2x8xf32>
    %c0_109 = arith.constant 0 : index
    %c0_110 = arith.constant 0 : index
    %157 = vector.load %arg9[%c0_109, %c0_110] : memref<1x8xf32, #tpu.memory_space<vmem>>, vector<1x8xf32>
    %158 = vector.broadcast %157 : vector<1x8xf32> to vector<2x8xf32>
    %159 = arith.addf %156, %158 : vector<2x8xf32>
    %c0_111 = arith.constant 0 : index
    %c0_112 = arith.constant 0 : index
    %160 = vector.load %arg24[%c0_111, %c0_112] : memref<2x8xf32, #tpu.memory_space<vmem>>, vector<2x8xf32>
    tpu.vector_store %arg24[%c0_111, %c0_112], %154 {strides = array<i32>} : memref<2x8xf32, #tpu.memory_space<vmem>>, vector<2x8xf32>,
    %c0_113 = arith.constant 0 : index
    %c0_114 = arith.constant 0 : index
    %161 = vector.load %arg25[%c0_113, %c0_114] : memref<2x8xf32, #tpu.memory_space<vmem>>, vector<2x8xf32>
    tpu.vector_store %arg25[%c0_113, %c0_114], %159 {strides = array<i32>} : memref<2x8xf32, #tpu.memory_space<vmem>>, vector<2x8xf32>,
    %c0_115 = arith.constant 0 : index
    %c0_116 = arith.constant 0 : index
    %162 = vector.load %arg1[%c0_115, %c0_116] : memref<2x8xf32, #tpu.memory_space<vmem>>, vector<2x8xf32>
    %cst_117 = arith.constant 5.000000e-01 : f32
    %163 = vector.broadcast %cst_117 : f32 to vector<2x8xf32>
    %164 = arith.mulf %163, %159 : vector<2x8xf32>
    %165 = math.exp %164 : vector<2x8xf32>
    %166 = arith.mulf %162, %165 : vector<2x8xf32>
    %167 = arith.addf %154, %166 : vector<2x8xf32>
    %c0_118 = arith.constant 0 : index
    %c0_119 = arith.constant 0 : index
    %168 = vector.load %arg10[%c0_118, %c0_119] : memref<8x16xf32, #tpu.memory_space<vmem>>, vector<8x16xf32>
    %cst_120 = arith.constant dense<0.000000e+00> : vector<2x16xf32>
    %169 = tpu.matmul %167, %168, %cst_120 {dimension_numbers = #tpu.dot_dimension_numbers<[1], [0], [0], [1], [0, 0, 1, 1], [], []>} : vector<2x8xf32>, vector<8x16xf32>, vector<2x16xf32> -> vector<2x16xf32>
    %c0_121 = arith.constant 0 : index
    %c0_122 = arith.constant 0 : index
    %170 = vector.load %arg11[%c0_121, %c0_122] : memref<1x16xf32, #tpu.memory_space<vmem>>, vector<1x16xf32>
    %171 = vector.broadcast %170 : vector<1x16xf32> to vector<2x16xf32>
    %172 = arith.addf %169, %171 : vector<2x16xf32>
    %cst_123 = arith.constant 0.000000e+00 : f32
    %173 = vector.broadcast %cst_123 : f32 to vector<2x16xf32>
    %174 = arith.maximumf %172, %173 : vector<2x16xf32>
    %c0_124 = arith.constant 0 : index
    %c0_125 = arith.constant 0 : index
    %175 = vector.load %arg12[%c0_124, %c0_125] : memref<16x200xf32, #tpu.memory_space<vmem>>, vector<16x200xf32>
    %cst_126 = arith.constant dense<0.000000e+00> : vector<2x200xf32>
    %176 = tpu.matmul %174, %175, %cst_126 {dimension_numbers = #tpu.dot_dimension_numbers<[1], [0], [0], [1], [0, 0, 1, 1], [], []>} : vector<2x16xf32>, vector<16x200xf32>, vector<2x200xf32> -> vector<2x200xf32>
    %c0_127 = arith.constant 0 : index
    %c0_128 = arith.constant 0 : index
    %177 = vector.load %arg13[%c0_127, %c0_128] : memref<1x200xf32, #tpu.memory_space<vmem>>, vector<1x200xf32>
    %178 = vector.broadcast %177 : vector<1x200xf32> to vector<2x200xf32>
    %179 = arith.addf %176, %178 : vector<2x200xf32>
    %180 = arith.negf %179 : vector<2x200xf32>
    %181 = math.exp %180 : vector<2x200xf32>
    %cst_129 = arith.constant 1.000000e+00 : f32
    %182 = vector.broadcast %cst_129 : f32 to vector<2x200xf32>
    %183 = arith.addf %182, %181 : vector<2x200xf32>
    %184 = arith.divf %182, %183 : vector<2x200xf32>
    %c0_130 = arith.constant 0 : index
    %c0_131 = arith.constant 0 : index
    %185 = vector.load %arg23[%c0_130, %c0_131] : memref<2x200xf32, #tpu.memory_space<vmem>>, vector<2x200xf32>
    tpu.vector_store %arg23[%c0_130, %c0_131], %184 {strides = array<i32>} : memref<2x200xf32, #tpu.memory_space<vmem>>, vector<2x200xf32>,
    %c0_132 = arith.constant 0 : index
    %c0_133 = arith.constant 0 : index
    %186 = vector.load %arg14[%c0_132, %c0_133] : memref<8x16xf32, #tpu.memory_space<vmem>>, vector<8x16xf32>
    %cst_134 = arith.constant dense<0.000000e+00> : vector<2x16xf32>
    %187 = tpu.matmul %167, %186, %cst_134 {dimension_numbers = #tpu.dot_dimension_numbers<[1], [0], [0], [1], [0, 0, 1, 1], [], []>} : vector<2x8xf32>, vector<8x16xf32>, vector<2x16xf32> -> vector<2x16xf32>
    %c0_135 = arith.constant 0 : index
    %c0_136 = arith.constant 0 : index
    %188 = vector.load %arg15[%c0_135, %c0_136] : memref<1x16xf32, #tpu.memory_space<vmem>>, vector<1x16xf32>
    %189 = vector.broadcast %188 : vector<1x16xf32> to vector<2x16xf32>
    %190 = arith.addf %187, %189 : vector<2x16xf32>
    %c0_137 = arith.constant 0 : index
    %c0_138 = arith.constant 0 : index
    %191 = vector.load %arg28[%c0_137, %c0_138] : memref<2x16xf32, #tpu.memory_space<vmem>>, vector<2x16xf32>
    tpu.vector_store %arg28[%c0_137, %c0_138], %190 {strides = array<i32>} : memref<2x16xf32, #tpu.memory_space<vmem>>, vector<2x16xf32>,
    %c0_139 = arith.constant 0 : index
    %c0_140 = arith.constant 0 : index
    %192 = vector.load %arg28[%c0_139, %c0_140] : memref<2x16xf32, #tpu.memory_space<vmem>>, vector<2x16xf32>
    %c0_141 = arith.constant 0 : index
    %c0_142 = arith.constant 0 : index
    %c0_143 = arith.constant 0 : index
    %193 = vector.load %arg16[%c0_141, %c0_142, %c0_143] : memref<4x16x8xf32, #tpu.memory_space<vmem>>, vector<1x16x8xf32>
    %194 = vector.shape_cast %193 : vector<1x16x8xf32> to vector<16x8xf32>
    %cst_144 = arith.constant dense<0.000000e+00> : vector<2x8xf32>
    %195 = tpu.matmul %192, %194, %cst_144 {dimension_numbers = #tpu.dot_dimension_numbers<[1], [0], [0], [1], [0, 0, 1, 1], [], []>} : vector<2x16xf32>, vector<16x8xf32>, vector<2x8xf32> -> vector<2x8xf32>
    %c0_145 = arith.constant 0 : index
    %c0_146 = arith.constant 0 : index
    %196 = vector.load %arg29[%c0_145, %c0_146] : memref<8x8xf32, #tpu.memory_space<vmem>>, vector<2x8xf32>
    tpu.vector_store %arg29[%c0_145, %c0_146], %195 {strides = array<i32>} : memref<8x8xf32, #tpu.memory_space<vmem>>, vector<2x8xf32>,
    %c1_147 = arith.constant 1 : index
    %c0_148 = arith.constant 0 : index
    %c0_149 = arith.constant 0 : index
    %197 = vector.load %arg16[%c1_147, %c0_148, %c0_149] : memref<4x16x8xf32, #tpu.memory_space<vmem>>, vector<1x16x8xf32>
    %198 = vector.shape_cast %197 : vector<1x16x8xf32> to vector<16x8xf32>
    %cst_150 = arith.constant dense<0.000000e+00> : vector<2x8xf32>
    %199 = tpu.matmul %192, %198, %cst_150 {dimension_numbers = #tpu.dot_dimension_numbers<[1], [0], [0], [1], [0, 0, 1, 1], [], []>} : vector<2x16xf32>, vector<16x8xf32>, vector<2x8xf32> -> vector<2x8xf32>
    %c2_151 = arith.constant 2 : index
    %c0_152 = arith.constant 0 : index
    %200 = vector.load %arg29[%c2_151, %c0_152] : memref<8x8xf32, #tpu.memory_space<vmem>>, vector<2x8xf32>
    tpu.vector_store %arg29[%c2_151, %c0_152], %199 {strides = array<i32>} : memref<8x8xf32, #tpu.memory_space<vmem>>, vector<2x8xf32>,
    %c2_153 = arith.constant 2 : index
    %c0_154 = arith.constant 0 : index
    %c0_155 = arith.constant 0 : index
    %201 = vector.load %arg16[%c2_153, %c0_154, %c0_155] : memref<4x16x8xf32, #tpu.memory_space<vmem>>, vector<1x16x8xf32>
    %202 = vector.shape_cast %201 : vector<1x16x8xf32> to vector<16x8xf32>
    %cst_156 = arith.constant dense<0.000000e+00> : vector<2x8xf32>
    %203 = tpu.matmul %192, %202, %cst_156 {dimension_numbers = #tpu.dot_dimension_numbers<[1], [0], [0], [1], [0, 0, 1, 1], [], []>} : vector<2x16xf32>, vector<16x8xf32>, vector<2x8xf32> -> vector<2x8xf32>
    %c4_157 = arith.constant 4 : index
    %c0_158 = arith.constant 0 : index
    %204 = vector.load %arg29[%c4_157, %c0_158] : memref<8x8xf32, #tpu.memory_space<vmem>>, vector<2x8xf32>
    tpu.vector_store %arg29[%c4_157, %c0_158], %203 {strides = array<i32>} : memref<8x8xf32, #tpu.memory_space<vmem>>, vector<2x8xf32>,
    %c3_159 = arith.constant 3 : index
    %c0_160 = arith.constant 0 : index
    %c0_161 = arith.constant 0 : index
    %205 = vector.load %arg16[%c3_159, %c0_160, %c0_161] : memref<4x16x8xf32, #tpu.memory_space<vmem>>, vector<1x16x8xf32>
    %206 = vector.shape_cast %205 : vector<1x16x8xf32> to vector<16x8xf32>
    %cst_162 = arith.constant dense<0.000000e+00> : vector<2x8xf32>
    %207 = tpu.matmul %192, %206, %cst_162 {dimension_numbers = #tpu.dot_dimension_numbers<[1], [0], [0], [1], [0, 0, 1, 1], [], []>} : vector<2x16xf32>, vector<16x8xf32>, vector<2x8xf32> -> vector<2x8xf32>
    %c6_163 = arith.constant 6 : index
    %c0_164 = arith.constant 0 : index
    %208 = vector.load %arg29[%c6_163, %c0_164] : memref<8x8xf32, #tpu.memory_space<vmem>>, vector<2x8xf32>
    tpu.vector_store %arg29[%c6_163, %c0_164], %207 {strides = array<i32>} : memref<8x8xf32, #tpu.memory_space<vmem>>, vector<2x8xf32>,
    %c0_165 = arith.constant 0 : index
    %c0_166 = arith.constant 0 : index
    %209 = vector.load %arg29[%c0_165, %c0_166] : memref<8x8xf32, #tpu.memory_space<vmem>>, vector<8x8xf32>
    %c0_167 = arith.constant 0 : index
    %c0_168 = arith.constant 0 : index
    %210 = vector.load %arg17[%c0_167, %c0_168] : memref<1x8xf32, #tpu.memory_space<vmem>>, vector<1x8xf32>
    %211 = vector.broadcast %210 : vector<1x8xf32> to vector<8x8xf32>
    %212 = arith.addf %209, %211 : vector<8x8xf32>
    %213 = math.tanh %212 : vector<8x8xf32>
    %c0_169 = arith.constant 0 : index
    %c0_170 = arith.constant 0 : index
    %214 = vector.load %arg29[%c0_169, %c0_170] : memref<8x8xf32, #tpu.memory_space<vmem>>, vector<8x8xf32>
    tpu.vector_store %arg29[%c0_169, %c0_170], %213 {strides = array<i32>} : memref<8x8xf32, #tpu.memory_space<vmem>>, vector<8x8xf32>,
    %c0_171 = arith.constant 0 : index
    %c0_172 = arith.constant 0 : index
    %215 = vector.load %arg29[%c0_171, %c0_172] : memref<8x8xf32, #tpu.memory_space<vmem>>, vector<2x8xf32>
    %c0_173 = arith.constant 0 : index
    %c0_174 = arith.constant 0 : index
    %c0_175 = arith.constant 0 : index
    %216 = vector.load %arg18[%c0_173, %c0_174, %c0_175] : memref<4x8x4xf32, #tpu.memory_space<vmem>>, vector<1x8x4xf32>
    %217 = vector.shape_cast %216 : vector<1x8x4xf32> to vector<8x4xf32>
    %cst_176 = arith.constant dense<0.000000e+00> : vector<2x4xf32>
    %218 = tpu.matmul %215, %217, %cst_176 {dimension_numbers = #tpu.dot_dimension_numbers<[1], [0], [0], [1], [0, 0, 1, 1], [], []>} : vector<2x8xf32>, vector<8x4xf32>, vector<2x4xf32> -> vector<2x4xf32>
    %c0_177 = arith.constant 0 : index
    %c0_178 = arith.constant 0 : index
    %219 = vector.load %arg30[%c0_177, %c0_178] : memref<32x4xf32, #tpu.memory_space<vmem>>, vector<2x4xf32>
    tpu.vector_store %arg30[%c0_177, %c0_178], %218 {strides = array<i32>} : memref<32x4xf32, #tpu.memory_space<vmem>>, vector<2x4xf32>,
    %c1_179 = arith.constant 1 : index
    %c0_180 = arith.constant 0 : index
    %c0_181 = arith.constant 0 : index
    %220 = vector.load %arg18[%c1_179, %c0_180, %c0_181] : memref<4x8x4xf32, #tpu.memory_space<vmem>>, vector<1x8x4xf32>
    %221 = vector.shape_cast %220 : vector<1x8x4xf32> to vector<8x4xf32>
    %cst_182 = arith.constant dense<0.000000e+00> : vector<2x4xf32>
    %222 = tpu.matmul %215, %221, %cst_182 {dimension_numbers = #tpu.dot_dimension_numbers<[1], [0], [0], [1], [0, 0, 1, 1], [], []>} : vector<2x8xf32>, vector<8x4xf32>, vector<2x4xf32> -> vector<2x4xf32>
    %c2_183 = arith.constant 2 : index
    %c0_184 = arith.constant 0 : index
    %223 = vector.load %arg30[%c2_183, %c0_184] : memref<32x4xf32, #tpu.memory_space<vmem>>, vector<2x4xf32>
    tpu.vector_store %arg30[%c2_183, %c0_184], %222 {strides = array<i32>} : memref<32x4xf32, #tpu.memory_space<vmem>>, vector<2x4xf32>,
    %c2_185 = arith.constant 2 : index
    %c0_186 = arith.constant 0 : index
    %c0_187 = arith.constant 0 : index
    %224 = vector.load %arg18[%c2_185, %c0_186, %c0_187] : memref<4x8x4xf32, #tpu.memory_space<vmem>>, vector<1x8x4xf32>
    %225 = vector.shape_cast %224 : vector<1x8x4xf32> to vector<8x4xf32>
    %cst_188 = arith.constant dense<0.000000e+00> : vector<2x4xf32>
    %226 = tpu.matmul %215, %225, %cst_188 {dimension_numbers = #tpu.dot_dimension_numbers<[1], [0], [0], [1], [0, 0, 1, 1], [], []>} : vector<2x8xf32>, vector<8x4xf32>, vector<2x4xf32> -> vector<2x4xf32>
    %c4_189 = arith.constant 4 : index
    %c0_190 = arith.constant 0 : index
    %227 = vector.load %arg30[%c4_189, %c0_190] : memref<32x4xf32, #tpu.memory_space<vmem>>, vector<2x4xf32>
    tpu.vector_store %arg30[%c4_189, %c0_190], %226 {strides = array<i32>} : memref<32x4xf32, #tpu.memory_space<vmem>>, vector<2x4xf32>,
    %c3_191 = arith.constant 3 : index
    %c0_192 = arith.constant 0 : index
    %c0_193 = arith.constant 0 : index
    %228 = vector.load %arg18[%c3_191, %c0_192, %c0_193] : memref<4x8x4xf32, #tpu.memory_space<vmem>>, vector<1x8x4xf32>
    %229 = vector.shape_cast %228 : vector<1x8x4xf32> to vector<8x4xf32>
    %cst_194 = arith.constant dense<0.000000e+00> : vector<2x4xf32>
    %230 = tpu.matmul %215, %229, %cst_194 {dimension_numbers = #tpu.dot_dimension_numbers<[1], [0], [0], [1], [0, 0, 1, 1], [], []>} : vector<2x8xf32>, vector<8x4xf32>, vector<2x4xf32> -> vector<2x4xf32>
    %c6_195 = arith.constant 6 : index
    %c0_196 = arith.constant 0 : index
    %231 = vector.load %arg30[%c6_195, %c0_196] : memref<32x4xf32, #tpu.memory_space<vmem>>, vector<2x4xf32>
    tpu.vector_store %arg30[%c6_195, %c0_196], %230 {strides = array<i32>} : memref<32x4xf32, #tpu.memory_space<vmem>>, vector<2x4xf32>,
    %c2_197 = arith.constant 2 : index
    %c0_198 = arith.constant 0 : index
    %232 = vector.load %arg29[%c2_197, %c0_198] : memref<8x8xf32, #tpu.memory_space<vmem>>, vector<2x8xf32>
    %c0_199 = arith.constant 0 : index
    %c0_200 = arith.constant 0 : index
    %c0_201 = arith.constant 0 : index
    %233 = vector.load %arg18[%c0_199, %c0_200, %c0_201] : memref<4x8x4xf32, #tpu.memory_space<vmem>>, vector<1x8x4xf32>
    %234 = vector.shape_cast %233 : vector<1x8x4xf32> to vector<8x4xf32>
    %cst_202 = arith.constant dense<0.000000e+00> : vector<2x4xf32>
    %235 = tpu.matmul %232, %234, %cst_202 {dimension_numbers = #tpu.dot_dimension_numbers<[1], [0], [0], [1], [0, 0, 1, 1], [], []>} : vector<2x8xf32>, vector<8x4xf32>, vector<2x4xf32> -> vector<2x4xf32>
    %c8_203 = arith.constant 8 : index
    %c0_204 = arith.constant 0 : index
    %236 = vector.load %arg30[%c8_203, %c0_204] : memref<32x4xf32, #tpu.memory_space<vmem>>, vector<2x4xf32>
    tpu.vector_store %arg30[%c8_203, %c0_204], %235 {strides = array<i32>} : memref<32x4xf32, #tpu.memory_space<vmem>>, vector<2x4xf32>,
    %c1_205 = arith.constant 1 : index
    %c0_206 = arith.constant 0 : index
    %c0_207 = arith.constant 0 : index
    %237 = vector.load %arg18[%c1_205, %c0_206, %c0_207] : memref<4x8x4xf32, #tpu.memory_space<vmem>>, vector<1x8x4xf32>
    %238 = vector.shape_cast %237 : vector<1x8x4xf32> to vector<8x4xf32>
    %cst_208 = arith.constant dense<0.000000e+00> : vector<2x4xf32>
    %239 = tpu.matmul %232, %238, %cst_208 {dimension_numbers = #tpu.dot_dimension_numbers<[1], [0], [0], [1], [0, 0, 1, 1], [], []>} : vector<2x8xf32>, vector<8x4xf32>, vector<2x4xf32> -> vector<2x4xf32>
    %c10_209 = arith.constant 10 : index
    %c0_210 = arith.constant 0 : index
    %240 = vector.load %arg30[%c10_209, %c0_210] : memref<32x4xf32, #tpu.memory_space<vmem>>, vector<2x4xf32>
    tpu.vector_store %arg30[%c10_209, %c0_210], %239 {strides = array<i32>} : memref<32x4xf32, #tpu.memory_space<vmem>>, vector<2x4xf32>,
    %c2_211 = arith.constant 2 : index
    %c0_212 = arith.constant 0 : index
    %c0_213 = arith.constant 0 : index
    %241 = vector.load %arg18[%c2_211, %c0_212, %c0_213] : memref<4x8x4xf32, #tpu.memory_space<vmem>>, vector<1x8x4xf32>
    %242 = vector.shape_cast %241 : vector<1x8x4xf32> to vector<8x4xf32>
    %cst_214 = arith.constant dense<0.000000e+00> : vector<2x4xf32>
    %243 = tpu.matmul %232, %242, %cst_214 {dimension_numbers = #tpu.dot_dimension_numbers<[1], [0], [0], [1], [0, 0, 1, 1], [], []>} : vector<2x8xf32>, vector<8x4xf32>, vector<2x4xf32> -> vector<2x4xf32>
    %c12_215 = arith.constant 12 : index
    %c0_216 = arith.constant 0 : index
    %244 = vector.load %arg30[%c12_215, %c0_216] : memref<32x4xf32, #tpu.memory_space<vmem>>, vector<2x4xf32>
    tpu.vector_store %arg30[%c12_215, %c0_216], %243 {strides = array<i32>} : memref<32x4xf32, #tpu.memory_space<vmem>>, vector<2x4xf32>,
    %c3_217 = arith.constant 3 : index
    %c0_218 = arith.constant 0 : index
    %c0_219 = arith.constant 0 : index
    %245 = vector.load %arg18[%c3_217, %c0_218, %c0_219] : memref<4x8x4xf32, #tpu.memory_space<vmem>>, vector<1x8x4xf32>
    %246 = vector.shape_cast %245 : vector<1x8x4xf32> to vector<8x4xf32>
    %cst_220 = arith.constant dense<0.000000e+00> : vector<2x4xf32>
    %247 = tpu.matmul %232, %246, %cst_220 {dimension_numbers = #tpu.dot_dimension_numbers<[1], [0], [0], [1], [0, 0, 1, 1], [], []>} : vector<2x8xf32>, vector<8x4xf32>, vector<2x4xf32> -> vector<2x4xf32>
    %c14_221 = arith.constant 14 : index
    %c0_222 = arith.constant 0 : index
    %248 = vector.load %arg30[%c14_221, %c0_222] : memref<32x4xf32, #tpu.memory_space<vmem>>, vector<2x4xf32>
    tpu.vector_store %arg30[%c14_221, %c0_222], %247 {strides = array<i32>} : memref<32x4xf32, #tpu.memory_space<vmem>>, vector<2x4xf32>,
    %c4_223 = arith.constant 4 : index
    %c0_224 = arith.constant 0 : index
    %249 = vector.load %arg29[%c4_223, %c0_224] : memref<8x8xf32, #tpu.memory_space<vmem>>, vector<2x8xf32>
    %c0_225 = arith.constant 0 : index
    %c0_226 = arith.constant 0 : index
    %c0_227 = arith.constant 0 : index
    %250 = vector.load %arg18[%c0_225, %c0_226, %c0_227] : memref<4x8x4xf32, #tpu.memory_space<vmem>>, vector<1x8x4xf32>
    %251 = vector.shape_cast %250 : vector<1x8x4xf32> to vector<8x4xf32>
    %cst_228 = arith.constant dense<0.000000e+00> : vector<2x4xf32>
    %252 = tpu.matmul %249, %251, %cst_228 {dimension_numbers = #tpu.dot_dimension_numbers<[1], [0], [0], [1], [0, 0, 1, 1], [], []>} : vector<2x8xf32>, vector<8x4xf32>, vector<2x4xf32> -> vector<2x4xf32>
    %c16_229 = arith.constant 16 : index
    %c0_230 = arith.constant 0 : index
    %253 = vector.load %arg30[%c16_229, %c0_230] : memref<32x4xf32, #tpu.memory_space<vmem>>, vector<2x4xf32>
    tpu.vector_store %arg30[%c16_229, %c0_230], %252 {strides = array<i32>} : memref<32x4xf32, #tpu.memory_space<vmem>>, vector<2x4xf32>,
    %c1_231 = arith.constant 1 : index
    %c0_232 = arith.constant 0 : index
    %c0_233 = arith.constant 0 : index
    %254 = vector.load %arg18[%c1_231, %c0_232, %c0_233] : memref<4x8x4xf32, #tpu.memory_space<vmem>>, vector<1x8x4xf32>
    %255 = vector.shape_cast %254 : vector<1x8x4xf32> to vector<8x4xf32>
    %cst_234 = arith.constant dense<0.000000e+00> : vector<2x4xf32>
    %256 = tpu.matmul %249, %255, %cst_234 {dimension_numbers = #tpu.dot_dimension_numbers<[1], [0], [0], [1], [0, 0, 1, 1], [], []>} : vector<2x8xf32>, vector<8x4xf32>, vector<2x4xf32> -> vector<2x4xf32>
    %c18_235 = arith.constant 18 : index
    %c0_236 = arith.constant 0 : index
    %257 = vector.load %arg30[%c18_235, %c0_236] : memref<32x4xf32, #tpu.memory_space<vmem>>, vector<2x4xf32>
    tpu.vector_store %arg30[%c18_235, %c0_236], %256 {strides = array<i32>} : memref<32x4xf32, #tpu.memory_space<vmem>>, vector<2x4xf32>,
    %c2_237 = arith.constant 2 : index
    %c0_238 = arith.constant 0 : index
    %c0_239 = arith.constant 0 : index
    %258 = vector.load %arg18[%c2_237, %c0_238, %c0_239] : memref<4x8x4xf32, #tpu.memory_space<vmem>>, vector<1x8x4xf32>
    %259 = vector.shape_cast %258 : vector<1x8x4xf32> to vector<8x4xf32>
    %cst_240 = arith.constant dense<0.000000e+00> : vector<2x4xf32>
    %260 = tpu.matmul %249, %259, %cst_240 {dimension_numbers = #tpu.dot_dimension_numbers<[1], [0], [0], [1], [0, 0, 1, 1], [], []>} : vector<2x8xf32>, vector<8x4xf32>, vector<2x4xf32> -> vector<2x4xf32>
    %c20_241 = arith.constant 20 : index
    %c0_242 = arith.constant 0 : index
    %261 = vector.load %arg30[%c20_241, %c0_242] : memref<32x4xf32, #tpu.memory_space<vmem>>, vector<2x4xf32>
    tpu.vector_store %arg30[%c20_241, %c0_242], %260 {strides = array<i32>} : memref<32x4xf32, #tpu.memory_space<vmem>>, vector<2x4xf32>,
    %c3_243 = arith.constant 3 : index
    %c0_244 = arith.constant 0 : index
    %c0_245 = arith.constant 0 : index
    %262 = vector.load %arg18[%c3_243, %c0_244, %c0_245] : memref<4x8x4xf32, #tpu.memory_space<vmem>>, vector<1x8x4xf32>
    %263 = vector.shape_cast %262 : vector<1x8x4xf32> to vector<8x4xf32>
    %cst_246 = arith.constant dense<0.000000e+00> : vector<2x4xf32>
    %264 = tpu.matmul %249, %263, %cst_246 {dimension_numbers = #tpu.dot_dimension_numbers<[1], [0], [0], [1], [0, 0, 1, 1], [], []>} : vector<2x8xf32>, vector<8x4xf32>, vector<2x4xf32> -> vector<2x4xf32>
    %c22_247 = arith.constant 22 : index
    %c0_248 = arith.constant 0 : index
    %265 = vector.load %arg30[%c22_247, %c0_248] : memref<32x4xf32, #tpu.memory_space<vmem>>, vector<2x4xf32>
    tpu.vector_store %arg30[%c22_247, %c0_248], %264 {strides = array<i32>} : memref<32x4xf32, #tpu.memory_space<vmem>>, vector<2x4xf32>,
    %c6_249 = arith.constant 6 : index
    %c0_250 = arith.constant 0 : index
    %266 = vector.load %arg29[%c6_249, %c0_250] : memref<8x8xf32, #tpu.memory_space<vmem>>, vector<2x8xf32>
    %c0_251 = arith.constant 0 : index
    %c0_252 = arith.constant 0 : index
    %c0_253 = arith.constant 0 : index
    %267 = vector.load %arg18[%c0_251, %c0_252, %c0_253] : memref<4x8x4xf32, #tpu.memory_space<vmem>>, vector<1x8x4xf32>
    %268 = vector.shape_cast %267 : vector<1x8x4xf32> to vector<8x4xf32>
    %cst_254 = arith.constant dense<0.000000e+00> : vector<2x4xf32>
    %269 = tpu.matmul %266, %268, %cst_254 {dimension_numbers = #tpu.dot_dimension_numbers<[1], [0], [0], [1], [0, 0, 1, 1], [], []>} : vector<2x8xf32>, vector<8x4xf32>, vector<2x4xf32> -> vector<2x4xf32>
    %c24_255 = arith.constant 24 : index
    %c0_256 = arith.constant 0 : index
    %270 = vector.load %arg30[%c24_255, %c0_256] : memref<32x4xf32, #tpu.memory_space<vmem>>, vector<2x4xf32>
    tpu.vector_store %arg30[%c24_255, %c0_256], %269 {strides = array<i32>} : memref<32x4xf32, #tpu.memory_space<vmem>>, vector<2x4xf32>,
    %c1_257 = arith.constant 1 : index
    %c0_258 = arith.constant 0 : index
    %c0_259 = arith.constant 0 : index
    %271 = vector.load %arg18[%c1_257, %c0_258, %c0_259] : memref<4x8x4xf32, #tpu.memory_space<vmem>>, vector<1x8x4xf32>
    %272 = vector.shape_cast %271 : vector<1x8x4xf32> to vector<8x4xf32>
    %cst_260 = arith.constant dense<0.000000e+00> : vector<2x4xf32>
    %273 = tpu.matmul %266, %272, %cst_260 {dimension_numbers = #tpu.dot_dimension_numbers<[1], [0], [0], [1], [0, 0, 1, 1], [], []>} : vector<2x8xf32>, vector<8x4xf32>, vector<2x4xf32> -> vector<2x4xf32>
    %c26_261 = arith.constant 26 : index
    %c0_262 = arith.constant 0 : index
    %274 = vector.load %arg30[%c26_261, %c0_262] : memref<32x4xf32, #tpu.memory_space<vmem>>, vector<2x4xf32>
    tpu.vector_store %arg30[%c26_261, %c0_262], %273 {strides = array<i32>} : memref<32x4xf32, #tpu.memory_space<vmem>>, vector<2x4xf32>,
    %c2_263 = arith.constant 2 : index
    %c0_264 = arith.constant 0 : index
    %c0_265 = arith.constant 0 : index
    %275 = vector.load %arg18[%c2_263, %c0_264, %c0_265] : memref<4x8x4xf32, #tpu.memory_space<vmem>>, vector<1x8x4xf32>
    %276 = vector.shape_cast %275 : vector<1x8x4xf32> to vector<8x4xf32>
    %cst_266 = arith.constant dense<0.000000e+00> : vector<2x4xf32>
    %277 = tpu.matmul %266, %276, %cst_266 {dimension_numbers = #tpu.dot_dimension_numbers<[1], [0], [0], [1], [0, 0, 1, 1], [], []>} : vector<2x8xf32>, vector<8x4xf32>, vector<2x4xf32> -> vector<2x4xf32>
    %c28_267 = arith.constant 28 : index
    %c0_268 = arith.constant 0 : index
    %278 = vector.load %arg30[%c28_267, %c0_268] : memref<32x4xf32, #tpu.memory_space<vmem>>, vector<2x4xf32>
    tpu.vector_store %arg30[%c28_267, %c0_268], %277 {strides = array<i32>} : memref<32x4xf32, #tpu.memory_space<vmem>>, vector<2x4xf32>,
    %c3_269 = arith.constant 3 : index
    %c0_270 = arith.constant 0 : index
    %c0_271 = arith.constant 0 : index
    %279 = vector.load %arg18[%c3_269, %c0_270, %c0_271] : memref<4x8x4xf32, #tpu.memory_space<vmem>>, vector<1x8x4xf32>
    %280 = vector.shape_cast %279 : vector<1x8x4xf32> to vector<8x4xf32>
    %cst_272 = arith.constant dense<0.000000e+00> : vector<2x4xf32>
    %281 = tpu.matmul %266, %280, %cst_272 {dimension_numbers = #tpu.dot_dimension_numbers<[1], [0], [0], [1], [0, 0, 1, 1], [], []>} : vector<2x8xf32>, vector<8x4xf32>, vector<2x4xf32> -> vector<2x4xf32>
    %c30_273 = arith.constant 30 : index
    %c0_274 = arith.constant 0 : index
    %282 = vector.load %arg30[%c30_273, %c0_274] : memref<32x4xf32, #tpu.memory_space<vmem>>, vector<2x4xf32>
    tpu.vector_store %arg30[%c30_273, %c0_274], %281 {strides = array<i32>} : memref<32x4xf32, #tpu.memory_space<vmem>>, vector<2x4xf32>,
    %c0_275 = arith.constant 0 : index
    %c0_276 = arith.constant 0 : index
    %283 = vector.load %arg30[%c0_275, %c0_276] : memref<32x4xf32, #tpu.memory_space<vmem>>, vector<32x4xf32>
    %c0_277 = arith.constant 0 : index
    %c0_278 = arith.constant 0 : index
    %284 = vector.load %arg19[%c0_277, %c0_278] : memref<1x4xf32, #tpu.memory_space<vmem>>, vector<1x4xf32>
    %285 = vector.broadcast %284 : vector<1x4xf32> to vector<32x4xf32>
    %286 = arith.addf %283, %285 : vector<32x4xf32>
    %287 = math.tanh %286 : vector<32x4xf32>
    %c0_279 = arith.constant 0 : index
    %c0_280 = arith.constant 0 : index
    %288 = vector.load %arg30[%c0_279, %c0_280] : memref<32x4xf32, #tpu.memory_space<vmem>>, vector<32x4xf32>
    tpu.vector_store %arg30[%c0_279, %c0_280], %287 {strides = array<i32>} : memref<32x4xf32, #tpu.memory_space<vmem>>, vector<32x4xf32>,
    %cst_281 = arith.constant 0.000000e+00 : f32
    %289 = vector.broadcast %cst_281 : f32 to vector<36x4xf32>
    %c0_282 = arith.constant 0 : index
    %c0_283 = arith.constant 0 : index
    %290 = vector.load %arg31[%c0_282, %c0_283] : memref<36x4xf32, #tpu.memory_space<vmem>>, vector<36x4xf32>
    tpu.vector_store %arg31[%c0_282, %c0_283], %289 {strides = array<i32>} : memref<36x4xf32, #tpu.memory_space<vmem>>, vector<36x4xf32>,
    %c0_284 = arith.constant 0 : index
    %c0_285 = arith.constant 0 : index
    %291 = vector.load %arg30[%c0_284, %c0_285] : memref<32x4xf32, #tpu.memory_space<vmem>>, vector<32x4xf32>
    %c2_286 = arith.constant 2 : index
    %c0_287 = arith.constant 0 : index
    %292 = vector.load %arg31[%c2_286, %c0_287] : memref<36x4xf32, #tpu.memory_space<vmem>>, vector<32x4xf32>
    tpu.vector_store %arg31[%c2_286, %c0_287], %291 {strides = array<i32>} : memref<36x4xf32, #tpu.memory_space<vmem>>, vector<32x4xf32>,
    %c0_288 = arith.constant 0 : index
    %c0_289 = arith.constant 0 : index
    %293 = vector.load %arg21[%c0_288, %c0_289] : memref<1x1xf32, #tpu.memory_space<vmem>>, vector<1x1xf32>
    %c0_290 = arith.constant 0 : index
    %c0_291 = arith.constant 0 : index
    %c0_292 = arith.constant 0 : index
    %294 = vector.load %arg20[%c0_290, %c0_291, %c0_292] : memref<3x1x4xf32, #tpu.memory_space<vmem>>, vector<1x1x4xf32>
    %295 = vector.shape_cast %294 : vector<1x1x4xf32> to vector<1x4xf32>
    %c4_293 = arith.constant 4 : index
    %c0_294 = arith.constant 0 : index
    %296 = vector.load %arg31[%c4_293, %c0_294] : memref<36x4xf32, #tpu.memory_space<vmem>>, vector<32x4xf32>
    %297 = vector.broadcast %295 : vector<1x4xf32> to vector<32x4xf32>
    %298 = arith.mulf %296, %297 : vector<32x4xf32>
    %cst_295 = arith.constant dense<0.000000e+00> : vector<32xf32>
    %299 = vector.multi_reduction <add>, %298, %cst_295 [1] : vector<32x4xf32> to vector<32xf32>
    %300 = vector.shape_cast %299 : vector<32xf32> to vector<32x1xf32>
    %301 = vector.broadcast %293 : vector<1x1xf32> to vector<32x1xf32>
    %302 = arith.addf %301, %300 : vector<32x1xf32>
    %c1_296 = arith.constant 1 : index
    %c0_297 = arith.constant 0 : index
    %c0_298 = arith.constant 0 : index
    %303 = vector.load %arg20[%c1_296, %c0_297, %c0_298] : memref<3x1x4xf32, #tpu.memory_space<vmem>>, vector<1x1x4xf32>
    %304 = vector.shape_cast %303 : vector<1x1x4xf32> to vector<1x4xf32>
    %c2_299 = arith.constant 2 : index
    %c0_300 = arith.constant 0 : index
    %305 = vector.load %arg31[%c2_299, %c0_300] : memref<36x4xf32, #tpu.memory_space<vmem>>, vector<32x4xf32>
    %306 = vector.broadcast %304 : vector<1x4xf32> to vector<32x4xf32>
    %307 = arith.mulf %305, %306 : vector<32x4xf32>
    %cst_301 = arith.constant dense<0.000000e+00> : vector<32xf32>
    %308 = vector.multi_reduction <add>, %307, %cst_301 [1] : vector<32x4xf32> to vector<32xf32>
    %309 = vector.shape_cast %308 : vector<32xf32> to vector<32x1xf32>
    %310 = arith.addf %302, %309 : vector<32x1xf32>
    %c2_302 = arith.constant 2 : index
    %c0_303 = arith.constant 0 : index
    %c0_304 = arith.constant 0 : index
    %311 = vector.load %arg20[%c2_302, %c0_303, %c0_304] : memref<3x1x4xf32, #tpu.memory_space<vmem>>, vector<1x1x4xf32>
    %312 = vector.shape_cast %311 : vector<1x1x4xf32> to vector<1x4xf32>
    %c0_305 = arith.constant 0 : index
    %c0_306 = arith.constant 0 : index
    %313 = vector.load %arg31[%c0_305, %c0_306] : memref<36x4xf32, #tpu.memory_space<vmem>>, vector<32x4xf32>
    %314 = vector.broadcast %312 : vector<1x4xf32> to vector<32x4xf32>
    %315 = arith.mulf %313, %314 : vector<32x4xf32>
    %cst_307 = arith.constant dense<0.000000e+00> : vector<32xf32>
    %316 = vector.multi_reduction <add>, %315, %cst_307 [1] : vector<32x4xf32> to vector<32xf32>
    %317 = vector.shape_cast %316 : vector<32xf32> to vector<32x1xf32>
    %318 = arith.addf %310, %317 : vector<32x1xf32>
    %c0_308 = arith.constant 0 : index
    %c0_309 = arith.constant 0 : index
    %319 = vector.load %arg22[%c0_308, %c0_309] : memref<32x1xf32, #tpu.memory_space<vmem>>, vector<32x1xf32>
    tpu.vector_store %arg22[%c0_308, %c0_309], %318 {strides = array<i32>} : memref<32x1xf32, #tpu.memory_space<vmem>>, vector<32x1xf32>,
    return
  }
}

</mosaic_0001>

<llo_original>
// kernel: forward.1
$region0: #{forward.1}
  #allocation0 [shape = 'u32[]', space=smem, size = 0x4, offset = 0x4, fixed_abs, tag = 'smem constant byte address 0x4 - core index']
  #allocation1 [shape = 'u32[72,128]{1,0:T(1,128)}', space=vmem, size = 0x9000, scoped, tag = 'internal scratch']
  #allocation2 [shape = 'f32[8,8]{1,0:T(8,128)}', space=vmem, size = 0x1000, scoped, tag = 'scratch operand']
  #allocation3 [shape = 'f32[2,16]{1,0:T(2,128)}', space=vmem, size = 0x400, scoped, tag = 'scratch operand']
  #allocation4 [shape = 'f32[2,16]{1,0:T(2,128)}', space=vmem, size = 0x400, scoped, tag = 'scratch operand']
  #allocation5 [shape = 'f32[8,8]{1,0:T(8,128)}', space=vmem, size = 0x1000, scoped, tag = 'scratch operand']
  #allocation6 [shape = 'f32[32,4]{1,0:T(8,128)}', space=vmem, size = 0x4000, scoped, tag = 'scratch operand']
  #allocation7 [shape = 'f32[36,4]{1,0:T(8,128)}', space=vmem, size = 0x5000, scoped, tag = 'scratch operand']
  #allocation8 [shape = 'f32[1,1]{1,0:T(1,128)S(1)}', space=vmem, size = 0x200, scoped, tag = 'scoped memory for forward.1']
  %s0 = inlined_call_operand.vmem [shape: f32[32,1], index: 0, kind: input, shape index: {}]
  %s1 = inlined_call_operand.vmem [shape: f32[2,8], index: 1, kind: input, shape index: {}]
  %s2 = inlined_call_operand.vmem [shape: f32[4,1,8], index: 2, kind: input, shape index: {}]
  %s3 = inlined_call_operand.vmem [shape: f32[1,8], index: 3, kind: input, shape index: {}]
  %s4 = inlined_call_operand.vmem [shape: f32[4,8,16], index: 4, kind: input, shape index: {}]
  %s5 = inlined_call_operand.vmem [shape: f32[1,16], index: 5, kind: input, shape index: {}]
  %s6 = inlined_call_operand.vmem [shape: f32[16,8], index: 6, kind: input, shape index: {}]
  %s7 = inlined_call_operand.vmem [shape: f32[1,8], index: 7, kind: input, shape index: {}]
  %s8 = inlined_call_operand.vmem [shape: f32[16,8], index: 8, kind: input, shape index: {}]
  %s9 = inlined_call_operand.vmem [shape: f32[1,8], index: 9, kind: input, shape index: {}]
  %s10 = inlined_call_operand.vmem [shape: f32[8,16], index: 10, kind: input, shape index: {}]
  %s11 = inlined_call_operand.vmem [shape: f32[1,16], index: 11, kind: input, shape index: {}]
  %s12 = inlined_call_operand.vmem [shape: f32[16,200], index: 12, kind: input, shape index: {}]
  %s13 = inlined_call_operand.vmem [shape: f32[1,200], index: 13, kind: input, shape index: {}]
  %s14 = inlined_call_operand.vmem [shape: f32[8,16], index: 14, kind: input, shape index: {}]
  %s15 = inlined_call_operand.vmem [shape: f32[1,16], index: 15, kind: input, shape index: {}]
  %s16 = inlined_call_operand.vmem [shape: f32[4,16,8], index: 16, kind: input, shape index: {}]
  %s17 = inlined_call_operand.vmem [shape: f32[1,8], index: 17, kind: input, shape index: {}]
  %s18 = inlined_call_operand.vmem [shape: f32[4,8,4], index: 18, kind: input, shape index: {}]
  %s19 = inlined_call_operand.vmem [shape: f32[1,4], index: 19, kind: input, shape index: {}]
  %s20 = inlined_call_operand.vmem [shape: f32[3,1,4], index: 20, kind: input, shape index: {}]
  %s21 = inlined_call_operand.<no memory space> [shape: f32[1,1], index: 21, kind: input, shape index: {}]
  %s22 = inlined_call_operand.vmem [shape: f32[32,1], index: 22, kind: output, shape index: {0}]
  %s23 = inlined_call_operand.hbm [shape: f32[2,200], index: 23, kind: output, shape index: {1}]
  %s24 = inlined_call_operand.hbm [shape: f32[2,8], index: 24, kind: output, shape index: {2}]
  %s25 = inlined_call_operand.hbm [shape: f32[2,8], index: 25, kind: output, shape index: {3}]
  %26 = xla_tuple %s22, %s23, %s24, %s25
  %s27 = sld [smem:[#allocation0]]
  $region122: #{forward.1} parent=0
    _
  %s29 = ssub.s32 1, %s27
  %s30 = scalar_select 0, %s29, %s27
  %v31 = vstv %s21
  %32 = vst [vmem:[#allocation8] sm:$0x1] %v31
  $region1: #{forward.1} parent=0
    #allocation9 [shape = 'u8[2048]{0}', space=vmem, size = 0x800, scoped, tag = 'output window, operand 1, single buffered']
    #allocation10 [shape = 's32[1]{0}', space=sflag, size = 0x4, scoped, tag = 'scoped memory for forward.1']
    #allocation11 [shape = 'u8[1024]{0}', space=vmem, size = 0x400, scoped, tag = 'output window, operand 2, single buffered']
    #allocation12 [shape = 's32[1]{0}', space=sflag, size = 0x4, scoped, tag = 'scoped memory for forward.1']
    #allocation13 [shape = 'u8[1024]{0}', space=vmem, size = 0x400, scoped, tag = 'output window, operand 3, single buffered']
    %33 = vsyncpa [#allocation10], 0
    %34 = vsyncpa [#allocation12], 0
    // Predicated region
    $region2: #{forward.1} parent=1 // pred_check
      _
    $region3: #{forward.1} parent=1 // pred_check_branch
      %36 = sbr.rel (0) target = $region5
    $region4: #{forward.1} parent=1 // pred_region
      _
    $region5: #{forward.1} parent=1 // pred_fallthru
      _
    // Predicated region
    $region6: #{forward.1} parent=1 // pred_check
      _
    $region7: #{forward.1} parent=1 // pred_check_branch
      %38 = sbr.rel (0) target = $region9
    $region8: #{forward.1} parent=1 // pred_region
      _
    $region9: #{forward.1} parent=1 // pred_fallthru
      _
    // Predicated region
    $region10: #{forward.1} parent=1 // pred_check
      _
    $region11: #{forward.1} parent=1 // pred_check_branch
      %40 = sbr.rel (0) target = $region13
    $region12: #{forward.1} parent=1 // pred_region
      _
    $region13: #{forward.1} parent=1 // pred_fallthru
      _
    // Predicated region
    $region14: #{forward.1} parent=1 // pred_check
      _
    $region15: #{forward.1} parent=1 // pred_check_branch
      %42 = sbr.rel (0) target = $region17
    $region16: #{forward.1} parent=1 // pred_region
      _
    $region17: #{forward.1} parent=1 // pred_fallthru
      _
    // Predicated region
    $region18: #{forward.1} parent=1 // pred_check
      _
    $region19: #{forward.1} parent=1 // pred_check_branch
      %44 = sbr.rel (0) target = $region21
    $region20: #{forward.1} parent=1 // pred_region
      _
    $region21: #{forward.1} parent=1 // pred_fallthru
      _
    // Predicated region
    $region22: #{forward.1} parent=1 // pred_check
      _
    $region23: #{forward.1} parent=1 // pred_check_branch
      %46 = sbr.rel (0) target = $region25
    $region24: #{forward.1} parent=1 // pred_region
      _
    $region25: #{forward.1} parent=1 // pred_fallthru
      _
    // Predicated region
    $region26: #{forward.1} parent=1 // pred_check
      _
    $region27: #{forward.1} parent=1 // pred_check_branch
      %48 = sbr.rel (0) target = $region29
    $region28: #{forward.1} parent=1 // pred_region
      _
    $region29: #{forward.1} parent=1 // pred_fallthru
      _
    // Predicated region
    $region30: #{forward.1} parent=1 // pred_check
      _
    $region31: #{forward.1} parent=1 // pred_check_branch
      %50 = sbr.rel (0) target = $region33
    $region32: #{forward.1} parent=1 // pred_region
      _
    $region33: #{forward.1} parent=1 // pred_fallthru
      _
    // Predicated region
    $region34: #{forward.1} parent=1 // pred_check
      _
    $region35: #{forward.1} parent=1 // pred_check_branch
      %52 = sbr.rel (0) target = $region37
    $region36: #{forward.1} parent=1 // pred_region
      _
    $region37: #{forward.1} parent=1 // pred_fallthru
      _
    // Predicated region
    $region38: #{forward.1} parent=1 // pred_check
      _
    $region39: #{forward.1} parent=1 // pred_check_branch
      %54 = sbr.rel (0) target = $region41
    $region40: #{forward.1} parent=1 // pred_region
      _
    $region41: #{forward.1} parent=1 // pred_fallthru
      _
    // Predicated region
    $region42: #{forward.1} parent=1 // pred_check
      _
    $region43: #{forward.1} parent=1 // pred_check_branch
      %56 = sbr.rel (0) target = $region45
    $region44: #{forward.1} parent=1 // pred_region
      _
    $region45: #{forward.1} parent=1 // pred_fallthru
      _
    // Predicated region
    $region46: #{forward.1} parent=1 // pred_check
      _
    $region47: #{forward.1} parent=1 // pred_check_branch
      %58 = sbr.rel (0) target = $region49
    $region48: #{forward.1} parent=1 // pred_region
      _
    $region49: #{forward.1} parent=1 // pred_fallthru
      _
    // Predicated region
    $region50: #{forward.1} parent=1 // pred_check
      _
    $region51: #{forward.1} parent=1 // pred_check_branch
      %60 = sbr.rel (0) target = $region53
    $region52: #{forward.1} parent=1 // pred_region
      _
    $region53: #{forward.1} parent=1 // pred_fallthru
      _
    // Predicated region
    $region54: #{forward.1} parent=1 // pred_check
      _
    $region55: #{forward.1} parent=1 // pred_check_branch
      %62 = sbr.rel (0) target = $region57
    $region56: #{forward.1} parent=1 // pred_region
      _
    $region57: #{forward.1} parent=1 // pred_fallthru
      _
    // Predicated region
    $region58: #{forward.1} parent=1 // pred_check
      _
    $region59: #{forward.1} parent=1 // pred_check_branch
      %64 = sbr.rel (0) target = $region61
    $region60: #{forward.1} parent=1 // pred_region
      _
    $region61: #{forward.1} parent=1 // pred_fallthru
      _
    // Predicated region
    $region62: #{forward.1} parent=1 // pred_check
      _
    $region63: #{forward.1} parent=1 // pred_check_branch
      %66 = sbr.rel (0) target = $region65
    $region64: #{forward.1} parent=1 // pred_region
      _
    $region65: #{forward.1} parent=1 // pred_fallthru
      _
    // Predicated region
    $region66: #{forward.1} parent=1 // pred_check
      _
    $region67: #{forward.1} parent=1 // pred_check_branch
      %68 = sbr.rel (0) target = $region69
    $region68: #{forward.1} parent=1 // pred_region
      _
    $region69: #{forward.1} parent=1 // pred_fallthru
      _
    // Predicated region
    $region70: #{forward.1} parent=1 // pred_check
      _
    $region71: #{forward.1} parent=1 // pred_check_branch
      %70 = sbr.rel (0) target = $region73
    $region72: #{forward.1} parent=1 // pred_region
      _
    $region73: #{forward.1} parent=1 // pred_fallthru
      _
    // Predicated region
    $region74: #{forward.1} parent=1 // pred_check
      _
    $region75: #{forward.1} parent=1 // pred_check_branch
      %72 = sbr.rel (0) target = $region77
    $region76: #{forward.1} parent=1 // pred_region
      _
    $region77: #{forward.1} parent=1 // pred_fallthru
      _
    // Predicated region
    $region78: #{forward.1} parent=1 // pred_check
      _
    $region79: #{forward.1} parent=1 // pred_check_branch
      %74 = sbr.rel (0) target = $region81
    $region80: #{forward.1} parent=1 // pred_region
      _
    $region81: #{forward.1} parent=1 // pred_fallthru
      _
    // Predicated region
    $region82: #{forward.1} parent=1 // pred_check
      _
    $region83: #{forward.1} parent=1 // pred_check_branch
      %76 = sbr.rel (0) target = $region85
    $region84: #{forward.1} parent=1 // pred_region
      _
    $region85: #{forward.1} parent=1 // pred_fallthru
      _
    // Predicated region
    $region86: #{forward.1} parent=1 // pred_check
      _
    $region87: #{forward.1} parent=1 // pred_check_branch
      %78 = sbr.rel (0) target = $region89
    $region88: #{forward.1} parent=1 // pred_region
      _
    $region89: #{forward.1} parent=1 // pred_fallthru
      _
    %v79 = vld [vmem:[%s3] sm:$0x1]
    %v80 = vld [vmem:[%s0] sm:$0x3]
    %v81 = vld [vmem:[%s2] sm:$0x1]
    %83 = vset.pattern.permute.xlu0 0
    %84 = vperm.xlu0 %83, %v80
    %v85 = vpop.permute.xlu0 %84
    %v88 = vperm.slane %v81, 0
    %v90 = vmul.f32 %v85, %v88
    %v91 = vld [vmem:[%s0 + $0x2] sm:$0x3]
    %s92 = scalar_lea.vmem %s2, 1
    %v93 = vld [vmem:[%s92] sm:$0x1]
    %95 = vset.pattern.permute.xlu0 0
    %96 = vperm.xlu0 %95, %v91
    %v97 = vpop.permute.xlu0 %96
    %v100 = vperm.slane %v93, 0
    %v102 = vmul.f32 %v97, %v100
    %v103 = vadd.f32 %v90, %v102
    %v104 = vld [vmem:[%s0 + $0x4] sm:$0x3]
    %s105 = scalar_lea.vmem %s2, 2
    %v106 = vld [vmem:[%s105] sm:$0x1]
    %108 = vset.pattern.permute.xlu0 0
    %109 = vperm.xlu0 %108, %v104
    %v110 = vpop.permute.xlu0 %109
    %v113 = vperm.slane %v106, 0
    %v115 = vmul.f32 %v110, %v113
    %v116 = vadd.f32 %v103, %v115
    %v117 = vld [vmem:[%s0 + $0x6] sm:$0x3]
    %s118 = scalar_lea.vmem %s2, 3
    %v119 = vld [vmem:[%s118] sm:$0x1]
    %121 = vset.pattern.permute.xlu0 0
    %122 = vperm.xlu0 %121, %v117
    %v123 = vpop.permute.xlu0 %122
    %v126 = vperm.slane %v119, 0
    %v128 = vmul.f32 %v123, %v126
    %v129 = vadd.f32 %v116, %v128
    %v131 = vperm.slane %v79, 0
    %v133 = vadd.f32 %v129, %v131
    %v134 = vtanh.pop %v133
    %vm135 = vcmask 58368
    %136 = vst.msk [vmem:[#allocation2] sm:$0x3] %vm135, %v134
    %v137 = vld [vmem:[%s0 + $0x8] sm:$0x3]
    %v138 = vld [vmem:[%s2] sm:$0x1]
    %140 = vset.pattern.permute.xlu0 0
    %141 = vperm.xlu0 %140, %v137
    %v142 = vpop.permute.xlu0 %141
    %v145 = vperm.slane %v138, 0
    %v147 = vmul.f32 %v142, %v145
    %v148 = vld [vmem:[%s0 + $0xa] sm:$0x3]
    %v149 = vld [vmem:[%s92] sm:$0x1]
    %151 = vset.pattern.permute.xlu0 0
    %152 = vperm.xlu0 %151, %v148
    %v153 = vpop.permute.xlu0 %152
    %v156 = vperm.slane %v149, 0
    %v158 = vmul.f32 %v153, %v156
    %v159 = vadd.f32 %v147, %v158
    %v160 = vld [vmem:[%s0 + $0xc] sm:$0x3]
    %v161 = vld [vmem:[%s105] sm:$0x1]
    %163 = vset.pattern.permute.xlu0 0
    %164 = vperm.xlu0 %163, %v160
    %v165 = vpop.permute.xlu0 %164
    %v168 = vperm.slane %v161, 0
    %v170 = vmul.f32 %v165, %v168
    %v171 = vadd.f32 %v159, %v170
    %v172 = vld [vmem:[%s0 + $0xe] sm:$0x3]
    %v173 = vld [vmem:[%s118] sm:$0x1]
    %175 = vset.pattern.permute.xlu0 0
    %176 = vperm.xlu0 %175, %v172
    %v177 = vpop.permute.xlu0 %176
    %v180 = vperm.slane %v173, 0
    %v182 = vmul.f32 %v177, %v180
    %v183 = vadd.f32 %v171, %v182
    %v184 = vadd.f32 %v183, %v131
    %v185 = vtanh.pop %v184
    %186 = vst.msk [vmem:[#allocation2 + $0x2] sm:$0x3] %vm135, %v185
    %v187 = vld [vmem:[%s0 + $0x10] sm:$0x3]
    %v188 = vld [vmem:[%s2] sm:$0x1]
    %190 = vset.pattern.permute.xlu0 0
    %191 = vperm.xlu0 %190, %v187
    %v192 = vpop.permute.xlu0 %191
    %v195 = vperm.slane %v188, 0
    %v197 = vmul.f32 %v192, %v195
    %v198 = vld [vmem:[%s0 + $0x12] sm:$0x3]
    %v199 = vld [vmem:[%s92] sm:$0x1]
    %201 = vset.pattern.permute.xlu0 0
    %202 = vperm.xlu0 %201, %v198
    %v203 = vpop.permute.xlu0 %202
    %v206 = vperm.slane %v199, 0
    %v208 = vmul.f32 %v203, %v206
    %v209 = vadd.f32 %v197, %v208
    %v210 = vld [vmem:[%s0 + $0x14] sm:$0x3]
    %v211 = vld [vmem:[%s105] sm:$0x1]
    %213 = vset.pattern.permute.xlu0 0
    %214 = vperm.xlu0 %213, %v210
    %v215 = vpop.permute.xlu0 %214
    %v218 = vperm.slane %v211, 0
    %v220 = vmul.f32 %v215, %v218
    %v221 = vadd.f32 %v209, %v220
    %v222 = vld [vmem:[%s0 + $0x16] sm:$0x3]
    %v223 = vld [vmem:[%s118] sm:$0x1]
    %225 = vset.pattern.permute.xlu0 0
    %226 = vperm.xlu0 %225, %v222
    %v227 = vpop.permute.xlu0 %226
    %v230 = vperm.slane %v223, 0
    %v232 = vmul.f32 %v227, %v230
    %v233 = vadd.f32 %v221, %v232
    %v234 = vadd.f32 %v233, %v131
    %v235 = vtanh.pop %v234
    %236 = vst.msk [vmem:[#allocation2 + $0x4] sm:$0x3] %vm135, %v235
    %v237 = vld [vmem:[%s0 + $0x18] sm:$0x3]
    %v238 = vld [vmem:[%s2] sm:$0x1]
    %240 = vset.pattern.permute.xlu0 0
    %241 = vperm.xlu0 %240, %v237
    %v242 = vpop.permute.xlu0 %241
    %v245 = vperm.slane %v238, 0
    %v247 = vmul.f32 %v242, %v245
    %v248 = vld [vmem:[%s0 + $0x1a] sm:$0x3]
    %v249 = vld [vmem:[%s92] sm:$0x1]
    %251 = vset.pattern.permute.xlu0 0
    %252 = vperm.xlu0 %251, %v248
    %v253 = vpop.permute.xlu0 %252
    %v256 = vperm.slane %v249, 0
    %v258 = vmul.f32 %v253, %v256
    %v259 = vadd.f32 %v247, %v258
    %v260 = vld [vmem:[%s0 + $0x1c] sm:$0x3]
    %v261 = vld [vmem:[%s105] sm:$0x1]
    %263 = vset.pattern.permute.xlu0 0
    %264 = vperm.xlu0 %263, %v260
    %v265 = vpop.permute.xlu0 %264
    %v268 = vperm.slane %v261, 0
    %v270 = vmul.f32 %v265, %v268
    %v271 = vadd.f32 %v259, %v270
    %v272 = vld [vmem:[%s0 + $0x1e] sm:$0x3]
    %v273 = vld [vmem:[%s118] sm:$0x1]
    %275 = vset.pattern.permute.xlu0 0
    %276 = vperm.xlu0 %275, %v272
    %v277 = vpop.permute.xlu0 %276
    %v280 = vperm.slane %v273, 0
    %v282 = vmul.f32 %v277, %v280
    %v283 = vadd.f32 %v271, %v282
    %v284 = vadd.f32 %v283, %v131
    %v285 = vtanh.pop %v284
    %286 = vst.msk [vmem:[#allocation2 + $0x6] sm:$0x3] %vm135, %v285
    %v287 = vld [vmem:[%s5] sm:$0x1]
    %v288 = vld [vmem:[#allocation2] sm:$0x3]
    %v289 = vld [vmem:[%s4] sm:$0xff]
    %v290 = vld [vmem:[#allocation2 + $0x2] sm:$0x3]
    %s291 = scalar_lea.vmem %s4, 8
    %v292 = vld [vmem:[%s291] sm:$0xff]
    %vm293 = vcmask 64512
    %v295 = vsel %vm293, %v290, 0
    %297 = vmatpush.msra.mxu0 0.0
    %298 = vmatpush.msra.mxu0 0.0
    %299 = vmatpush.msra.mxu0 0.0
    %300 = vmatpush.msra.mxu0 0.0
    %301 = vmatpush.msra.mxu0 0.0
    %302 = vmatpush.msra.mxu0 0.0
    %303 = vmatpush.msra.mxu0 0.0
    %304 = vmatpush.msra.mxu0 0.0
    %305 = vmatpush.msra.mxu0 0.0
    %306 = vmatpush.msra.mxu0 0.0
    %307 = vmatpush.msra.mxu0 0.0
    %308 = vmatpush.msra.mxu0 0.0
    %309 = vmatpush.msra.mxu0 0.0
    %310 = vmatpush.msra.mxu0 0.0
    %311 = vmatpush.msra.mxu0 0.0
    %312 = vmatpush.msra.mxu0 %v292
    %313 = vmatmul.f32.gmra.mxu0 %v295
    %v314 = vpop.f32.mrf.mxu0
    %v315 = vadd.f32 0.0, %v314
    %316 = vdwg.mxu0
    %v318 = vsel %vm293, %v288, 0
    %320 = vmatpush.msra.mxu0 0.0
    %321 = vmatpush.msra.mxu0 0.0
    %322 = vmatpush.msra.mxu0 0.0
    %323 = vmatpush.msra.mxu0 0.0
    %324 = vmatpush.msra.mxu0 0.0
    %325 = vmatpush.msra.mxu0 0.0
    %326 = vmatpush.msra.mxu0 0.0
    %327 = vmatpush.msra.mxu0 0.0
    %328 = vmatpush.msra.mxu0 0.0
    %329 = vmatpush.msra.mxu0 0.0
    %330 = vmatpush.msra.mxu0 0.0
    %331 = vmatpush.msra.mxu0 0.0
    %332 = vmatpush.msra.mxu0 0.0
    %333 = vmatpush.msra.mxu0 0.0
    %334 = vmatpush.msra.mxu0 0.0
    %335 = vmatpush.msra.mxu0 %v289
    %336 = vmatmul.f32.gmra.mxu0 %v318
    %v337 = vpop.f32.mrf.mxu0
    %v338 = vadd.f32 %v315, %v337
    %339 = vdwg.mxu0
    %v340 = vld [vmem:[#allocation2 + $0x4] sm:$0x3]
    %s341 = scalar_lea.vmem %s4, 16
    %v342 = vld [vmem:[%s341] sm:$0xff]
    %v344 = vsel %vm293, %v340, 0
    %346 = vmatpush.msra.mxu0 0.0
    %347 = vmatpush.msra.mxu0 0.0
    %348 = vmatpush.msra.mxu0 0.0
    %349 = vmatpush.msra.mxu0 0.0
    %350 = vmatpush.msra.mxu0 0.0
    %351 = vmatpush.msra.mxu0 0.0
    %352 = vmatpush.msra.mxu0 0.0
    %353 = vmatpush.msra.mxu0 0.0
    %354 = vmatpush.msra.mxu0 0.0
    %355 = vmatpush.msra.mxu0 0.0
    %356 = vmatpush.msra.mxu0 0.0
    %357 = vmatpush.msra.mxu0 0.0
    %358 = vmatpush.msra.mxu0 0.0
    %359 = vmatpush.msra.mxu0 0.0
    %360 = vmatpush.msra.mxu0 0.0
    %361 = vmatpush.msra.mxu0 %v342
    %362 = vmatmul.f32.gmra.mxu0 %v344
    %v363 = vpop.f32.mrf.mxu0
    %v364 = vadd.f32 0.0, %v363
    %365 = vdwg.mxu0
    %v366 = vadd.f32 %v338, %v364
    %v367 = vld [vmem:[#allocation2 + $0x6] sm:$0x3]
    %s368 = scalar_lea.vmem %s4, 24
    %v369 = vld [vmem:[%s368] sm:$0xff]
    %v371 = vsel %vm293, %v367, 0
    %373 = vmatpush.msra.mxu0 0.0
    %374 = vmatpush.msra.mxu0 0.0
    %375 = vmatpush.msra.mxu0 0.0
    %376 = vmatpush.msra.mxu0 0.0
    %377 = vmatpush.msra.mxu0 0.0
    %378 = vmatpush.msra.mxu0 0.0
    %379 = vmatpush.msra.mxu0 0.0
    %380 = vmatpush.msra.mxu0 0.0
    %381 = vmatpush.msra.mxu0 0.0
    %382 = vmatpush.msra.mxu0 0.0
    %383 = vmatpush.msra.mxu0 0.0
    %384 = vmatpush.msra.mxu0 0.0
    %385 = vmatpush.msra.mxu0 0.0
    %386 = vmatpush.msra.mxu0 0.0
    %387 = vmatpush.msra.mxu0 0.0
    %388 = vmatpush.msra.mxu0 %v369
    %389 = vmatmul.f32.gmra.mxu0 %v371
    %v390 = vpop.f32.mrf.mxu0
    %v391 = vadd.f32 0.0, %v390
    %392 = vdwg.mxu0
    %v393 = vadd.f32 %v366, %v391
    %v395 = vperm.slane %v287, 0
    %v397 = vadd.f32 %v393, %v395
    %v398 = vtanh.pop %v397
    %vm399 = vcmask 123904
    %400 = vst.msk [vmem:[#allocation3] sm:$0x3] %vm399, %v398
    %v401 = vld [vmem:[#allocation3] sm:$0x3]
    %v402 = vld [vmem:[%s6] sm:$0xff]
    %v403 = vld [vmem:[%s6 + $0x8] sm:$0xff]
    %v404 = vld [vmem:[%s7] sm:$0x1]
    %v406 = vperm.slane %v404, 0
    %vm408 = vcmask 130048
    %v410 = vsel %vm408, %v401, 0
    %412 = vmatpush.msra.mxu0 0.0
    %413 = vmatpush.msra.mxu0 0.0
    %414 = vmatpush.msra.mxu0 0.0
    %415 = vmatpush.msra.mxu0 0.0
    %416 = vmatpush.msra.mxu0 0.0
    %417 = vmatpush.msra.mxu0 0.0
    %418 = vmatpush.msra.mxu0 0.0
    %419 = vmatpush.msra.mxu0 0.0
    %420 = vmatpush.msra.mxu0 0.0
    %421 = vmatpush.msra.mxu0 0.0
    %422 = vmatpush.msra.mxu0 0.0
    %423 = vmatpush.msra.mxu0 0.0
    %424 = vmatpush.msra.mxu0 0.0
    %425 = vmatpush.msra.mxu0 0.0
    %426 = vmatpush.msra.mxu0 %v403
    %427 = vmatpush.msra.mxu0 %v402
    %428 = vmatmul.f32.gmra.mxu0 %v410
    %v429 = vpop.f32.mrf.mxu0
    %v430 = vadd.f32 %v406, %v429
    %431 = vdwg.mxu0
    %v432 = vld [vmem:[%s8] sm:$0xff]
    %v433 = vld [vmem:[%s8 + $0x8] sm:$0xff]
    %v434 = vld [vmem:[%s9] sm:$0x1]
    %v436 = vperm.slane %v434, 0
    %438 = vmatpush.msra.mxu0 0.0
    %439 = vmatpush.msra.mxu0 0.0
    %440 = vmatpush.msra.mxu0 0.0
    %441 = vmatpush.msra.mxu0 0.0
    %442 = vmatpush.msra.mxu0 0.0
    %443 = vmatpush.msra.mxu0 0.0
    %444 = vmatpush.msra.mxu0 0.0
    %445 = vmatpush.msra.mxu0 0.0
    %446 = vmatpush.msra.mxu0 0.0
    %447 = vmatpush.msra.mxu0 0.0
    %448 = vmatpush.msra.mxu0 0.0
    %449 = vmatpush.msra.mxu0 0.0
    %450 = vmatpush.msra.mxu0 0.0
    %451 = vmatpush.msra.mxu0 0.0
    %452 = vmatpush.msra.mxu0 %v433
    %453 = vmatpush.msra.mxu0 %v432
    %454 = vmatmul.f32.gmra.mxu0 %v410
    %v455 = vpop.f32.mrf.mxu0
    %v456 = vadd.f32 %v436, %v455
    %457 = vdwg.mxu0
    %458 = vst.msk [vmem:[#allocation11] sm:$0x3] %vm135, %v430
    %459 = vst.msk [vmem:[#allocation13] sm:$0x3] %vm135, %v456
    %v460 = vld [vmem:[%s1] sm:$0x3]
    %v461 = vmul.f32 %v456, 0.5
    %v462 = vmul.f32 %v461, 1.442695
    %v463 = vpow.pop %v462
    %v464 = vmul.f32 %v460, %v463
    %v465 = vadd.f32 %v430, %v464
    %v466 = vld [vmem:[%s10] sm:$0xff]
    %v467 = vld [vmem:[%s11] sm:$0x1]
    %v469 = vperm.slane %v467, 0
    %v472 = vsel %vm293, %v465, 0
    %474 = vmatpush.msra.mxu0 0.0
    %475 = vmatpush.msra.mxu0 0.0
    %476 = vmatpush.msra.mxu0 0.0
    %477 = vmatpush.msra.mxu0 0.0
    %478 = vmatpush.msra.mxu0 0.0
    %479 = vmatpush.msra.mxu0 0.0
    %480 = vmatpush.msra.mxu0 0.0
    %481 = vmatpush.msra.mxu0 0.0
    %482 = vmatpush.msra.mxu0 0.0
    %483 = vmatpush.msra.mxu0 0.0
    %484 = vmatpush.msra.mxu0 0.0
    %485 = vmatpush.msra.mxu0 0.0
    %486 = vmatpush.msra.mxu0 0.0
    %487 = vmatpush.msra.mxu0 0.0
    %488 = vmatpush.msra.mxu0 0.0
    %489 = vmatpush.msra.mxu0 %v466
    %490 = vmatmul.f32.gmra.mxu0 %v472
    %v491 = vpop.f32.mrf.mxu0
    %v492 = vadd.f32 %v469, %v491
    %493 = vdwg.mxu0
    %v494 = vmax.f32 %v492, 0.0
    %v495 = vld [vmem:[%s12] sm:$0xff]
    %v496 = vld [vmem:[%s12 + $0x8] sm:$0xff]
    %v497 = vld [vmem:[%s12 + $0x10] sm:$0xff]
    %v498 = vld [vmem:[%s12 + $0x18] sm:$0xff]
    %v499 = vld [vmem:[%s13] sm:$0x3]
    %v501 = vperm.slane %v499, 0
    %v502 = vperm.slane %v499, 1
    %v506 = vsel %vm408, %v494, 0
    %508 = vmatpush.msra.mxu0 0.0
    %509 = vmatpush.msra.mxu0 0.0
    %510 = vmatpush.msra.mxu0 0.0
    %511 = vmatpush.msra.mxu0 0.0
    %512 = vmatpush.msra.mxu0 0.0
    %513 = vmatpush.msra.mxu0 0.0
    %514 = vmatpush.msra.mxu0 0.0
    %515 = vmatpush.msra.mxu0 0.0
    %516 = vmatpush.msra.mxu0 0.0
    %517 = vmatpush.msra.mxu0 0.0
    %518 = vmatpush.msra.mxu0 0.0
    %519 = vmatpush.msra.mxu0 0.0
    %520 = vmatpush.msra.mxu0 0.0
    %521 = vmatpush.msra.mxu0 0.0
    %522 = vmatpush.msra.mxu0 %v497
    %523 = vmatpush.msra.mxu0 %v495
    %524 = vmatmul.f32.gmra.mxu0 %v506
    %v525 = vpop.f32.mrf.mxu0
    %v526 = vadd.f32 %v501, %v525
    %527 = vdwg.mxu0
    %528 = vmatpush.msra.mxu0 0.0
    %529 = vmatpush.msra.mxu0 0.0
    %530 = vmatpush.msra.mxu0 0.0
    %531 = vmatpush.msra.mxu0 0.0
    %532 = vmatpush.msra.mxu0 0.0
    %533 = vmatpush.msra.mxu0 0.0
    %534 = vmatpush.msra.mxu0 0.0
    %535 = vmatpush.msra.mxu0 0.0
    %536 = vmatpush.msra.mxu0 0.0
    %537 = vmatpush.msra.mxu0 0.0
    %538 = vmatpush.msra.mxu0 0.0
    %539 = vmatpush.msra.mxu0 0.0
    %540 = vmatpush.msra.mxu0 0.0
    %541 = vmatpush.msra.mxu0 0.0
    %542 = vmatpush.msra.mxu0 %v498
    %543 = vmatpush.msra.mxu0 %v496
    %544 = vmatmul.f32.gmra.mxu0 %v506
    %v545 = vpop.f32.mrf.mxu0
    %v546 = vadd.f32 %v502, %v545
    %547 = vdwg.mxu0
    %v548 = vxor.u32 %v526, 2147483648
    %v549 = vxor.u32 %v546, 2147483648
    %v550 = vmul.f32 %v548, 1.442695
    %v551 = vpow.pop %v550
    %v552 = vmul.f32 %v549, 1.442695
    %v553 = vpow.pop %v552
    %v554 = vadd.f32 %v551, 1.0
    %v555 = vadd.f32 %v553, 1.0
    %v556 = vrcp.pop %v554
    %v557 = vmul.f32 %v554, %v556
    %v558 = vsub.f32 1.0, %v557
    %v559 = vmul.f32 %v556, %v558
    %v560 = vadd.f32 %v556, %v559
    %vm561 = vweird.f32 %v554
    %vm562 = vweird.f32 %v556
    %vm563 = vmor %vm561, %vm562
    %v564 = vsel %vm563, %v556, %v560
    %v565 = vand.u32 2147483647, %v554
    %vm566 = vcmp.eq.f32.partialorder %v565, 8.507059e+37
    %v567 = vand.u32 %v554, 2147483648
    %v568 = vor.u32 1.1754944e-38, %v567
    %v569 = vsel %vm566, %v568, %v564
    %v570 = vmul.f32 1.0, %v569
    %v571 = vrcp.pop %v555
    %v572 = vmul.f32 %v555, %v571
    %v573 = vsub.f32 1.0, %v572
    %v574 = vmul.f32 %v571, %v573
    %v575 = vadd.f32 %v571, %v574
    %vm576 = vweird.f32 %v555
    %vm577 = vweird.f32 %v571
    %vm578 = vmor %vm576, %vm577
    %v579 = vsel %vm578, %v571, %v575
    %v580 = vand.u32 2147483647, %v555
    %vm581 = vcmp.eq.f32.partialorder %v580, 8.507059e+37
    %v582 = vand.u32 %v555, 2147483648
    %v583 = vor.u32 1.1754944e-38, %v582
    %v584 = vsel %vm581, %v583, %v579
    %v585 = vmul.f32 1.0, %v584
    %v588 = vrot.slane %v585, 6
    %vm589 = vcmask 1041408
    %v590 = vsel %vm589, %v570, %v588
    %vm592 = vcmask 584706
    %vm593 = vmor %vm592, %vm589
    %594 = vst.msk [vmem:[#allocation9] sm:$0xf] %vm593, %v590
    %v595 = vld [vmem:[%s14] sm:$0xff]
    %v596 = vld [vmem:[%s15] sm:$0x1]
    %v598 = vperm.slane %v596, 0
    %600 = vmatpush.msra.mxu0 0.0
    %601 = vmatpush.msra.mxu0 0.0
    %602 = vmatpush.msra.mxu0 0.0
    %603 = vmatpush.msra.mxu0 0.0
    %604 = vmatpush.msra.mxu0 0.0
    %605 = vmatpush.msra.mxu0 0.0
    %606 = vmatpush.msra.mxu0 0.0
    %607 = vmatpush.msra.mxu0 0.0
    %608 = vmatpush.msra.mxu0 0.0
    %609 = vmatpush.msra.mxu0 0.0
    %610 = vmatpush.msra.mxu0 0.0
    %611 = vmatpush.msra.mxu0 0.0
    %612 = vmatpush.msra.mxu0 0.0
    %613 = vmatpush.msra.mxu0 0.0
    %614 = vmatpush.msra.mxu0 0.0
    %615 = vmatpush.msra.mxu0 %v595
    %616 = vmatmul.f32.gmra.mxu0 %v472
    %v617 = vpop.f32.mrf.mxu0
    %v618 = vadd.f32 %v598, %v617
    %619 = vdwg.mxu0
    %620 = vst.msk [vmem:[#allocation4] sm:$0x3] %vm399, %v618
    %v621 = vld [vmem:[#allocation4] sm:$0x3]
    %v622 = vld [vmem:[%s16] sm:$0xff]
    %v623 = vld [vmem:[%s16 + $0x8] sm:$0xff]
    %v625 = vsel %vm408, %v621, 0
    %627 = vmatpush.msra.mxu0 0.0
    %628 = vmatpush.msra.mxu0 0.0
    %629 = vmatpush.msra.mxu0 0.0
    %630 = vmatpush.msra.mxu0 0.0
    %631 = vmatpush.msra.mxu0 0.0
    %632 = vmatpush.msra.mxu0 0.0
    %633 = vmatpush.msra.mxu0 0.0
    %634 = vmatpush.msra.mxu0 0.0
    %635 = vmatpush.msra.mxu0 0.0
    %636 = vmatpush.msra.mxu0 0.0
    %637 = vmatpush.msra.mxu0 0.0
    %638 = vmatpush.msra.mxu0 0.0
    %639 = vmatpush.msra.mxu0 0.0
    %640 = vmatpush.msra.mxu0 0.0
    %641 = vmatpush.msra.mxu0 %v623
    %642 = vmatpush.msra.mxu0 %v622
    %643 = vmatmul.f32.gmra.mxu0 %v625
    %v644 = vpop.f32.mrf.mxu0
    %v645 = vadd.f32 0.0, %v644
    %646 = vdwg.mxu0
    %647 = vst.msk [vmem:[#allocation5] sm:$0x3] %vm135, %v645
    %s648 = scalar_lea.vmem %s16, 16
    %v649 = vld [vmem:[%s648] sm:$0xff]
    %v650 = vld [vmem:[%s648 + $0x8] sm:$0xff]
    %651 = vmatpush.msra.mxu0 0.0
    %652 = vmatpush.msra.mxu0 0.0
    %653 = vmatpush.msra.mxu0 0.0
    %654 = vmatpush.msra.mxu0 0.0
    %655 = vmatpush.msra.mxu0 0.0
    %656 = vmatpush.msra.mxu0 0.0
    %657 = vmatpush.msra.mxu0 0.0
    %658 = vmatpush.msra.mxu0 0.0
    %659 = vmatpush.msra.mxu0 0.0
    %660 = vmatpush.msra.mxu0 0.0
    %661 = vmatpush.msra.mxu0 0.0
    %662 = vmatpush.msra.mxu0 0.0
    %663 = vmatpush.msra.mxu0 0.0
    %664 = vmatpush.msra.mxu0 0.0
    %665 = vmatpush.msra.mxu0 %v650
    %666 = vmatpush.msra.mxu0 %v649
    %667 = vmatmul.f32.gmra.mxu0 %v625
    %v668 = vpop.f32.mrf.mxu0
    %v669 = vadd.f32 0.0, %v668
    %670 = vdwg.mxu0
    %671 = vst.msk [vmem:[#allocation5 + $0x2] sm:$0x3] %vm135, %v669
    %s672 = scalar_lea.vmem %s16, 32
    %v673 = vld [vmem:[%s672] sm:$0xff]
    %v674 = vld [vmem:[%s672 + $0x8] sm:$0xff]
    %675 = vmatpush.msra.mxu0 0.0
    %676 = vmatpush.msra.mxu0 0.0
    %677 = vmatpush.msra.mxu0 0.0
    %678 = vmatpush.msra.mxu0 0.0
    %679 = vmatpush.msra.mxu0 0.0
    %680 = vmatpush.msra.mxu0 0.0
    %681 = vmatpush.msra.mxu0 0.0
    %682 = vmatpush.msra.mxu0 0.0
    %683 = vmatpush.msra.mxu0 0.0
    %684 = vmatpush.msra.mxu0 0.0
    %685 = vmatpush.msra.mxu0 0.0
    %686 = vmatpush.msra.mxu0 0.0
    %687 = vmatpush.msra.mxu0 0.0
    %688 = vmatpush.msra.mxu0 0.0
    %689 = vmatpush.msra.mxu0 %v674
    %690 = vmatpush.msra.mxu0 %v673
    %691 = vmatmul.f32.gmra.mxu0 %v625
    %v692 = vpop.f32.mrf.mxu0
    %v693 = vadd.f32 0.0, %v692
    %694 = vdwg.mxu0
    %695 = vst.msk [vmem:[#allocation5 + $0x4] sm:$0x3] %vm135, %v693
    %s696 = scalar_lea.vmem %s16, 48
    %v697 = vld [vmem:[%s696] sm:$0xff]
    %v698 = vld [vmem:[%s696 + $0x8] sm:$0xff]
    %699 = vmatpush.msra.mxu0 0.0
    %700 = vmatpush.msra.mxu0 0.0
    %701 = vmatpush.msra.mxu0 0.0
    %702 = vmatpush.msra.mxu0 0.0
    %703 = vmatpush.msra.mxu0 0.0
    %704 = vmatpush.msra.mxu0 0.0
    %705 = vmatpush.msra.mxu0 0.0
    %706 = vmatpush.msra.mxu0 0.0
    %707 = vmatpush.msra.mxu0 0.0
    %708 = vmatpush.msra.mxu0 0.0
    %709 = vmatpush.msra.mxu0 0.0
    %710 = vmatpush.msra.mxu0 0.0
    %711 = vmatpush.msra.mxu0 0.0
    %712 = vmatpush.msra.mxu0 0.0
    %713 = vmatpush.msra.mxu0 %v698
    %714 = vmatpush.msra.mxu0 %v697
    %715 = vmatmul.f32.gmra.mxu0 %v625
    %v716 = vpop.f32.mrf.mxu0
    %v717 = vadd.f32 0.0, %v716
    %718 = vdwg.mxu0
    %719 = vst.msk [vmem:[#allocation5 + $0x6] sm:$0x3] %vm135, %v717
    %v720 = vld [vmem:[#allocation5] sm:$0xff]
    %v721 = vld [vmem:[%s17] sm:$0x1]
    %v723 = vperm.slane %v721, 0
    %v725 = vadd.f32 %v720, %v723
    %v726 = vtanh.pop %v725
    %727 = vst.msk [vmem:[#allocation5] sm:$0xff] %vm293, %v726
    %v728 = vld [vmem:[#allocation5] sm:$0x3]
    %v729 = vld [vmem:[%s18] sm:$0xff]
    %v731 = vsel %vm293, %v728, 0
    %733 = vmatpush.msra.mxu0 0.0
    %734 = vmatpush.msra.mxu0 0.0
    %735 = vmatpush.msra.mxu0 0.0
    %736 = vmatpush.msra.mxu0 0.0
    %737 = vmatpush.msra.mxu0 0.0
    %738 = vmatpush.msra.mxu0 0.0
    %739 = vmatpush.msra.mxu0 0.0
    %740 = vmatpush.msra.mxu0 0.0
    %741 = vmatpush.msra.mxu0 0.0
    %742 = vmatpush.msra.mxu0 0.0
    %743 = vmatpush.msra.mxu0 0.0
    %744 = vmatpush.msra.mxu0 0.0
    %745 = vmatpush.msra.mxu0 0.0
    %746 = vmatpush.msra.mxu0 0.0
    %747 = vmatpush.msra.mxu0 0.0
    %748 = vmatpush.msra.mxu0 %v729
    %749 = vmatmul.f32.gmra.mxu0 %v731
    %v750 = vpop.f32.mrf.mxu0
    %v751 = vadd.f32 0.0, %v750
    %752 = vdwg.mxu0
    %vm753 = vcmask 25600
    %754 = vst.msk [vmem:[#allocation6] sm:$0x3] %vm753, %v751
    %s755 = scalar_lea.vmem %s18, 8
    %v756 = vld [vmem:[%s755] sm:$0xff]
    %757 = vmatpush.msra.mxu0 0.0
    %758 = vmatpush.msra.mxu0 0.0
    %759 = vmatpush.msra.mxu0 0.0
    %760 = vmatpush.msra.mxu0 0.0
    %761 = vmatpush.msra.mxu0 0.0
    %762 = vmatpush.msra.mxu0 0.0
    %763 = vmatpush.msra.mxu0 0.0
    %764 = vmatpush.msra.mxu0 0.0
    %765 = vmatpush.msra.mxu0 0.0
    %766 = vmatpush.msra.mxu0 0.0
    %767 = vmatpush.msra.mxu0 0.0
    %768 = vmatpush.msra.mxu0 0.0
    %769 = vmatpush.msra.mxu0 0.0
    %770 = vmatpush.msra.mxu0 0.0
    %771 = vmatpush.msra.mxu0 0.0
    %772 = vmatpush.msra.mxu0 %v756
    %773 = vmatmul.f32.gmra.mxu0 %v731
    %v774 = vpop.f32.mrf.mxu0
    %v775 = vadd.f32 0.0, %v774
    %776 = vdwg.mxu0
    %777 = vst.msk [vmem:[#allocation6 + $0x2] sm:$0x3] %vm753, %v775
    %s778 = scalar_lea.vmem %s18, 16
    %v779 = vld [vmem:[%s778] sm:$0xff]
    %780 = vmatpush.msra.mxu0 0.0
    %781 = vmatpush.msra.mxu0 0.0
    %782 = vmatpush.msra.mxu0 0.0
    %783 = vmatpush.msra.mxu0 0.0
    %784 = vmatpush.msra.mxu0 0.0
    %785 = vmatpush.msra.mxu0 0.0
    %786 = vmatpush.msra.mxu0 0.0
    %787 = vmatpush.msra.mxu0 0.0
    %788 = vmatpush.msra.mxu0 0.0
    %789 = vmatpush.msra.mxu0 0.0
    %790 = vmatpush.msra.mxu0 0.0
    %791 = vmatpush.msra.mxu0 0.0
    %792 = vmatpush.msra.mxu0 0.0
    %793 = vmatpush.msra.mxu0 0.0
    %794 = vmatpush.msra.mxu0 0.0
    %795 = vmatpush.msra.mxu0 %v779
    %796 = vmatmul.f32.gmra.mxu0 %v731
    %v797 = vpop.f32.mrf.mxu0
    %v798 = vadd.f32 0.0, %v797
    %799 = vdwg.mxu0
    %800 = vst.msk [vmem:[#allocation6 + $0x4] sm:$0x3] %vm753, %v798
    %s801 = scalar_lea.vmem %s18, 24
    %v802 = vld [vmem:[%s801] sm:$0xff]
    %803 = vmatpush.msra.mxu0 0.0
    %804 = vmatpush.msra.mxu0 0.0
    %805 = vmatpush.msra.mxu0 0.0
    %806 = vmatpush.msra.mxu0 0.0
    %807 = vmatpush.msra.mxu0 0.0
    %808 = vmatpush.msra.mxu0 0.0
    %809 = vmatpush.msra.mxu0 0.0
    %810 = vmatpush.msra.mxu0 0.0
    %811 = vmatpush.msra.mxu0 0.0
    %812 = vmatpush.msra.mxu0 0.0
    %813 = vmatpush.msra.mxu0 0.0
    %814 = vmatpush.msra.mxu0 0.0
    %815 = vmatpush.msra.mxu0 0.0
    %816 = vmatpush.msra.mxu0 0.0
    %817 = vmatpush.msra.mxu0 0.0
    %818 = vmatpush.msra.mxu0 %v802
    %819 = vmatmul.f32.gmra.mxu0 %v731
    %v820 = vpop.f32.mrf.mxu0
    %v821 = vadd.f32 0.0, %v820
    %822 = vdwg.mxu0
    %823 = vst.msk [vmem:[#allocation6 + $0x6] sm:$0x3] %vm753, %v821
    %v824 = vld [vmem:[#allocation5 + $0x2] sm:$0x3]
    %v825 = vld [vmem:[%s18] sm:$0xff]
    %v827 = vsel %vm293, %v824, 0
    %829 = vmatpush.msra.mxu0 0.0
    %830 = vmatpush.msra.mxu0 0.0
    %831 = vmatpush.msra.mxu0 0.0
    %832 = vmatpush.msra.mxu0 0.0
    %833 = vmatpush.msra.mxu0 0.0
    %834 = vmatpush.msra.mxu0 0.0
    %835 = vmatpush.msra.mxu0 0.0
    %836 = vmatpush.msra.mxu0 0.0
    %837 = vmatpush.msra.mxu0 0.0
    %838 = vmatpush.msra.mxu0 0.0
    %839 = vmatpush.msra.mxu0 0.0
    %840 = vmatpush.msra.mxu0 0.0
    %841 = vmatpush.msra.mxu0 0.0
    %842 = vmatpush.msra.mxu0 0.0
    %843 = vmatpush.msra.mxu0 0.0
    %844 = vmatpush.msra.mxu0 %v825
    %845 = vmatmul.f32.gmra.mxu0 %v827
    %v846 = vpop.f32.mrf.mxu0
    %v847 = vadd.f32 0.0, %v846
    %848 = vdwg.mxu0
    %849 = vst.msk [vmem:[#allocation6 + $0x8] sm:$0x3] %vm753, %v847
    %v850 = vld [vmem:[%s755] sm:$0xff]
    %851 = vmatpush.msra.mxu0 0.0
    %852 = vmatpush.msra.mxu0 0.0
    %853 = vmatpush.msra.mxu0 0.0
    %854 = vmatpush.msra.mxu0 0.0
    %855 = vmatpush.msra.mxu0 0.0
    %856 = vmatpush.msra.mxu0 0.0
    %857 = vmatpush.msra.mxu0 0.0
    %858 = vmatpush.msra.mxu0 0.0
    %859 = vmatpush.msra.mxu0 0.0
    %860 = vmatpush.msra.mxu0 0.0
    %861 = vmatpush.msra.mxu0 0.0
    %862 = vmatpush.msra.mxu0 0.0
    %863 = vmatpush.msra.mxu0 0.0
    %864 = vmatpush.msra.mxu0 0.0
    %865 = vmatpush.msra.mxu0 0.0
    %866 = vmatpush.msra.mxu0 %v850
    %867 = vmatmul.f32.gmra.mxu0 %v827
    %v868 = vpop.f32.mrf.mxu0
    %v869 = vadd.f32 0.0, %v868
    %870 = vdwg.mxu0
    %871 = vst.msk [vmem:[#allocation6 + $0xa] sm:$0x3] %vm753, %v869
    %v872 = vld [vmem:[%s778] sm:$0xff]
    %873 = vmatpush.msra.mxu0 0.0
    %874 = vmatpush.msra.mxu0 0.0
    %875 = vmatpush.msra.mxu0 0.0
    %876 = vmatpush.msra.mxu0 0.0
    %877 = vmatpush.msra.mxu0 0.0
    %878 = vmatpush.msra.mxu0 0.0
    %879 = vmatpush.msra.mxu0 0.0
    %880 = vmatpush.msra.mxu0 0.0
    %881 = vmatpush.msra.mxu0 0.0
    %882 = vmatpush.msra.mxu0 0.0
    %883 = vmatpush.msra.mxu0 0.0
    %884 = vmatpush.msra.mxu0 0.0
    %885 = vmatpush.msra.mxu0 0.0
    %886 = vmatpush.msra.mxu0 0.0
    %887 = vmatpush.msra.mxu0 0.0
    %888 = vmatpush.msra.mxu0 %v872
    %889 = vmatmul.f32.gmra.mxu0 %v827
    %v890 = vpop.f32.mrf.mxu0
    %v891 = vadd.f32 0.0, %v890
    %892 = vdwg.mxu0
    %893 = vst.msk [vmem:[#allocation6 + $0xc] sm:$0x3] %vm753, %v891
    %v894 = vld [vmem:[%s801] sm:$0xff]
    %895 = vmatpush.msra.mxu0 0.0
    %896 = vmatpush.msra.mxu0 0.0
    %897 = vmatpush.msra.mxu0 0.0
    %898 = vmatpush.msra.mxu0 0.0
    %899 = vmatpush.msra.mxu0 0.0
    %900 = vmatpush.msra.mxu0 0.0
    %901 = vmatpush.msra.mxu0 0.0
    %902 = vmatpush.msra.mxu0 0.0
    %903 = vmatpush.msra.mxu0 0.0
    %904 = vmatpush.msra.mxu0 0.0
    %905 = vmatpush.msra.mxu0 0.0
    %906 = vmatpush.msra.mxu0 0.0
    %907 = vmatpush.msra.mxu0 0.0
    %908 = vmatpush.msra.mxu0 0.0
    %909 = vmatpush.msra.mxu0 0.0
    %910 = vmatpush.msra.mxu0 %v894
    %911 = vmatmul.f32.gmra.mxu0 %v827
    %v912 = vpop.f32.mrf.mxu0
    %v913 = vadd.f32 0.0, %v912
    %914 = vdwg.mxu0
    %915 = vst.msk [vmem:[#allocation6 + $0xe] sm:$0x3] %vm753, %v913
    %v916 = vld [vmem:[#allocation5 + $0x4] sm:$0x3]
    %v917 = vld [vmem:[%s18] sm:$0xff]
    %v919 = vsel %vm293, %v916, 0
    %921 = vmatpush.msra.mxu0 0.0
    %922 = vmatpush.msra.mxu0 0.0
    %923 = vmatpush.msra.mxu0 0.0
    %924 = vmatpush.msra.mxu0 0.0
    %925 = vmatpush.msra.mxu0 0.0
    %926 = vmatpush.msra.mxu0 0.0
    %927 = vmatpush.msra.mxu0 0.0
    %928 = vmatpush.msra.mxu0 0.0
    %929 = vmatpush.msra.mxu0 0.0
    %930 = vmatpush.msra.mxu0 0.0
    %931 = vmatpush.msra.mxu0 0.0
    %932 = vmatpush.msra.mxu0 0.0
    %933 = vmatpush.msra.mxu0 0.0
    %934 = vmatpush.msra.mxu0 0.0
    %935 = vmatpush.msra.mxu0 0.0
    %936 = vmatpush.msra.mxu0 %v917
    %937 = vmatmul.f32.gmra.mxu0 %v919
    %v938 = vpop.f32.mrf.mxu0
    %v939 = vadd.f32 0.0, %v938
    %940 = vdwg.mxu0
    %941 = vst.msk [vmem:[#allocation6 + $0x10] sm:$0x3] %vm753, %v939
    %v942 = vld [vmem:[%s755] sm:$0xff]
    %943 = vmatpush.msra.mxu0 0.0
    %944 = vmatpush.msra.mxu0 0.0
    %945 = vmatpush.msra.mxu0 0.0
    %946 = vmatpush.msra.mxu0 0.0
    %947 = vmatpush.msra.mxu0 0.0
    %948 = vmatpush.msra.mxu0 0.0
    %949 = vmatpush.msra.mxu0 0.0
    %950 = vmatpush.msra.mxu0 0.0
    %951 = vmatpush.msra.mxu0 0.0
    %952 = vmatpush.msra.mxu0 0.0
    %953 = vmatpush.msra.mxu0 0.0
    %954 = vmatpush.msra.mxu0 0.0
    %955 = vmatpush.msra.mxu0 0.0
    %956 = vmatpush.msra.mxu0 0.0
    %957 = vmatpush.msra.mxu0 0.0
    %958 = vmatpush.msra.mxu0 %v942
    %959 = vmatmul.f32.gmra.mxu0 %v919
    %v960 = vpop.f32.mrf.mxu0
    %v961 = vadd.f32 0.0, %v960
    %962 = vdwg.mxu0
    %963 = vst.msk [vmem:[#allocation6 + $0x12] sm:$0x3] %vm753, %v961
    %v964 = vld [vmem:[%s778] sm:$0xff]
    %965 = vmatpush.msra.mxu0 0.0
    %966 = vmatpush.msra.mxu0 0.0
    %967 = vmatpush.msra.mxu0 0.0
    %968 = vmatpush.msra.mxu0 0.0
    %969 = vmatpush.msra.mxu0 0.0
    %970 = vmatpush.msra.mxu0 0.0
    %971 = vmatpush.msra.mxu0 0.0
    %972 = vmatpush.msra.mxu0 0.0
    %973 = vmatpush.msra.mxu0 0.0
    %974 = vmatpush.msra.mxu0 0.0
    %975 = vmatpush.msra.mxu0 0.0
    %976 = vmatpush.msra.mxu0 0.0
    %977 = vmatpush.msra.mxu0 0.0
    %978 = vmatpush.msra.mxu0 0.0
    %979 = vmatpush.msra.mxu0 0.0
    %980 = vmatpush.msra.mxu0 %v964
    %981 = vmatmul.f32.gmra.mxu0 %v919
    %v982 = vpop.f32.mrf.mxu0
    %v983 = vadd.f32 0.0, %v982
    %984 = vdwg.mxu0
    %985 = vst.msk [vmem:[#allocation6 + $0x14] sm:$0x3] %vm753, %v983
    %v986 = vld [vmem:[%s801] sm:$0xff]
    %987 = vmatpush.msra.mxu0 0.0
    %988 = vmatpush.msra.mxu0 0.0
    %989 = vmatpush.msra.mxu0 0.0
    %990 = vmatpush.msra.mxu0 0.0
    %991 = vmatpush.msra.mxu0 0.0
    %992 = vmatpush.msra.mxu0 0.0
    %993 = vmatpush.msra.mxu0 0.0
    %994 = vmatpush.msra.mxu0 0.0
    %995 = vmatpush.msra.mxu0 0.0
    %996 = vmatpush.msra.mxu0 0.0
    %997 = vmatpush.msra.mxu0 0.0
    %998 = vmatpush.msra.mxu0 0.0
    %999 = vmatpush.msra.mxu0 0.0
    %1000 = vmatpush.msra.mxu0 0.0
    %1001 = vmatpush.msra.mxu0 0.0
    %1002 = vmatpush.msra.mxu0 %v986
    %1003 = vmatmul.f32.gmra.mxu0 %v919
    %v1004 = vpop.f32.mrf.mxu0
    %v1005 = vadd.f32 0.0, %v1004
    %1006 = vdwg.mxu0
    %1007 = vst.msk [vmem:[#allocation6 + $0x16] sm:$0x3] %vm753, %v1005
    %v1008 = vld [vmem:[#allocation5 + $0x6] sm:$0x3]
    %v1009 = vld [vmem:[%s18] sm:$0xff]
    %v1011 = vsel %vm293, %v1008, 0
    %1013 = vmatpush.msra.mxu0 0.0
    %1014 = vmatpush.msra.mxu0 0.0
    %1015 = vmatpush.msra.mxu0 0.0
    %1016 = vmatpush.msra.mxu0 0.0
    %1017 = vmatpush.msra.mxu0 0.0
    %1018 = vmatpush.msra.mxu0 0.0
    %1019 = vmatpush.msra.mxu0 0.0
    %1020 = vmatpush.msra.mxu0 0.0
    %1021 = vmatpush.msra.mxu0 0.0
    %1022 = vmatpush.msra.mxu0 0.0
    %1023 = vmatpush.msra.mxu0 0.0
    %1024 = vmatpush.msra.mxu0 0.0
    %1025 = vmatpush.msra.mxu0 0.0
    %1026 = vmatpush.msra.mxu0 0.0
    %1027 = vmatpush.msra.mxu0 0.0
    %1028 = vmatpush.msra.mxu0 %v1009
    %1029 = vmatmul.f32.gmra.mxu0 %v1011
    %v1030 = vpop.f32.mrf.mxu0
    %v1031 = vadd.f32 0.0, %v1030
    %1032 = vdwg.mxu0
    %1033 = vst.msk [vmem:[#allocation6 + $0x18] sm:$0x3] %vm753, %v1031
    %v1034 = vld [vmem:[%s755] sm:$0xff]
    %1035 = vmatpush.msra.mxu0 0.0
    %1036 = vmatpush.msra.mxu0 0.0
    %1037 = vmatpush.msra.mxu0 0.0
    %1038 = vmatpush.msra.mxu0 0.0
    %1039 = vmatpush.msra.mxu0 0.0
    %1040 = vmatpush.msra.mxu0 0.0
    %1041 = vmatpush.msra.mxu0 0.0
    %1042 = vmatpush.msra.mxu0 0.0
    %1043 = vmatpush.msra.mxu0 0.0
    %1044 = vmatpush.msra.mxu0 0.0
    %1045 = vmatpush.msra.mxu0 0.0
    %1046 = vmatpush.msra.mxu0 0.0
    %1047 = vmatpush.msra.mxu0 0.0
    %1048 = vmatpush.msra.mxu0 0.0
    %1049 = vmatpush.msra.mxu0 0.0
    %1050 = vmatpush.msra.mxu0 %v1034
    %1051 = vmatmul.f32.gmra.mxu0 %v1011
    %v1052 = vpop.f32.mrf.mxu0
    %v1053 = vadd.f32 0.0, %v1052
    %1054 = vdwg.mxu0
    %1055 = vst.msk [vmem:[#allocation6 + $0x1a] sm:$0x3] %vm753, %v1053
    %v1056 = vld [vmem:[%s778] sm:$0xff]
    %1057 = vmatpush.msra.mxu0 0.0
    %1058 = vmatpush.msra.mxu0 0.0
    %1059 = vmatpush.msra.mxu0 0.0
    %1060 = vmatpush.msra.mxu0 0.0
    %1061 = vmatpush.msra.mxu0 0.0
    %1062 = vmatpush.msra.mxu0 0.0
    %1063 = vmatpush.msra.mxu0 0.0
    %1064 = vmatpush.msra.mxu0 0.0
    %1065 = vmatpush.msra.mxu0 0.0
    %1066 = vmatpush.msra.mxu0 0.0
    %1067 = vmatpush.msra.mxu0 0.0
    %1068 = vmatpush.msra.mxu0 0.0
    %1069 = vmatpush.msra.mxu0 0.0
    %1070 = vmatpush.msra.mxu0 0.0
    %1071 = vmatpush.msra.mxu0 0.0
    %1072 = vmatpush.msra.mxu0 %v1056
    %1073 = vmatmul.f32.gmra.mxu0 %v1011
    %v1074 = vpop.f32.mrf.mxu0
    %v1075 = vadd.f32 0.0, %v1074
    %1076 = vdwg.mxu0
    %1077 = vst.msk [vmem:[#allocation6 + $0x1c] sm:$0x3] %vm753, %v1075
    %v1078 = vld [vmem:[%s801] sm:$0xff]
    %1079 = vmatpush.msra.mxu0 0.0
    %1080 = vmatpush.msra.mxu0 0.0
    %1081 = vmatpush.msra.mxu0 0.0
    %1082 = vmatpush.msra.mxu0 0.0
    %1083 = vmatpush.msra.mxu0 0.0
    %1084 = vmatpush.msra.mxu0 0.0
    %1085 = vmatpush.msra.mxu0 0.0
    %1086 = vmatpush.msra.mxu0 0.0
    %1087 = vmatpush.msra.mxu0 0.0
    %1088 = vmatpush.msra.mxu0 0.0
    %1089 = vmatpush.msra.mxu0 0.0
    %1090 = vmatpush.msra.mxu0 0.0
    %1091 = vmatpush.msra.mxu0 0.0
    %1092 = vmatpush.msra.mxu0 0.0
    %1093 = vmatpush.msra.mxu0 0.0
    %1094 = vmatpush.msra.mxu0 %v1078
    %1095 = vmatmul.f32.gmra.mxu0 %v1011
    %v1096 = vpop.f32.mrf.mxu0
    %v1097 = vadd.f32 0.0, %v1096
    %1098 = vdwg.mxu0
    %1099 = vst.msk [vmem:[#allocation6 + $0x1e] sm:$0x3] %vm753, %v1097
    %v1100 = vld [vmem:[#allocation6] sm:$0xff]
    %v1101 = vld [vmem:[#allocation6 + $0x8] sm:$0xff]
    %v1102 = vld [vmem:[#allocation6 + $0x10] sm:$0xff]
    %v1103 = vld [vmem:[#allocation6 + $0x18] sm:$0xff]
    %v1104 = vld [vmem:[%s19] sm:$0x1]
    %v1106 = vperm.slane %v1104, 0
    %v1108 = vadd.f32 %v1100, %v1106
    %v1109 = vadd.f32 %v1101, %v1106
    %v1110 = vadd.f32 %v1102, %v1106
    %v1111 = vadd.f32 %v1103, %v1106
    %v1112 = vtanh.pop %v1108
    %v1113 = vtanh.pop %v1109
    %v1114 = vtanh.pop %v1110
    %v1115 = vtanh.pop %v1111
    %vm1116 = vcmask 31744
    %1117 = vst.msk [vmem:[#allocation6] sm:$0xff] %vm1116, %v1112
    %1118 = vst.msk [vmem:[#allocation6 + $0x8] sm:$0xff] %vm1116, %v1113
    %1119 = vst.msk [vmem:[#allocation6 + $0x10] sm:$0xff] %vm1116, %v1114
    %1120 = vst.msk [vmem:[#allocation6 + $0x18] sm:$0xff] %vm1116, %v1115
    %1121 = vst.msk [vmem:[#allocation7] sm:$0xff] %vm1116, 0.0
    %1122 = vst.msk [vmem:[#allocation7 + $0x8] sm:$0xff] %vm1116, 0.0
    %1123 = vst.msk [vmem:[#allocation7 + $0x10] sm:$0xff] %vm1116, 0.0
    %1124 = vst.msk [vmem:[#allocation7 + $0x18] sm:$0xff] %vm1116, 0.0
    %vm1125 = vcmask 27648
    %1126 = vst.msk [vmem:[#allocation7 + $0x20] sm:$0xf] %vm1125, 0.0
    %v1127 = vld [vmem:[#allocation6] sm:$0xff]
    %v1128 = vld [vmem:[#allocation6 + $0x8] sm:$0xff]
    %v1129 = vld [vmem:[#allocation6 + $0x10] sm:$0xff]
    %v1130 = vld [vmem:[#allocation6 + $0x18] sm:$0xff]
    %1131 = vst.msk [vmem:[#allocation7 + $0x2] sm:$0xff] %vm1116, %v1127
    %1132 = vst.msk [vmem:[#allocation7 + $0xa] sm:$0xff] %vm1116, %v1128
    %1133 = vst.msk [vmem:[#allocation7 + $0x12] sm:$0xff] %vm1116, %v1129
    %1134 = vst.msk [vmem:[#allocation7 + $0x1a] sm:$0xff] %vm1116, %v1130
    %v1135 = vld [vmem:[#allocation8] sm:$0x1]
    %v1136 = vld [vmem:[%s20] sm:$0x1]
    %v1137 = vld [vmem:[#allocation7 + $0x4] sm:$0xff]
    %v1138 = vld [vmem:[#allocation7 + $0xc] sm:$0xff]
    %v1139 = vld [vmem:[#allocation7 + $0x14] sm:$0xff]
    %v1140 = vld [vmem:[#allocation7 + $0x1c] sm:$0xff]
    %v1142 = vperm.slane %v1136, 0
    %v1144 = vmul.f32 %v1137, %v1142
    %v1145 = vmul.f32 %v1138, %v1142
    %v1146 = vmul.f32 %v1139, %v1142
    %v1147 = vmul.f32 %v1140, %v1142
    %v1148 = vsel %vm1116, %v1144, 0.0
    %1149 = vadd.xlane.f32.xlu0 %v1148
    %v1150 = vpop.xlane.xlu0 %1149
    %v1151 = vsel %vm1116, %v1145, 0.0
    %1152 = vadd.xlane.f32.xlu0 %v1151
    %v1153 = vpop.xlane.xlu0 %1152
    %v1154 = vsel %vm1116, %v1146, 0.0
    %1155 = vadd.xlane.f32.xlu0 %v1154
    %v1156 = vpop.xlane.xlu0 %1155
    %v1157 = vsel %vm1116, %v1147, 0.0
    %1158 = vadd.xlane.f32.xlu0 %v1157
    %v1159 = vpop.xlane.xlu0 %1158
    %v1161 = vperm.slane %v1135, 0
    %v1163 = vadd.f32 %v1161, %v1150
    %v1164 = vadd.f32 %v1161, %v1153
    %v1165 = vadd.f32 %v1161, %v1156
    %v1166 = vadd.f32 %v1161, %v1159
    %s1167 = scalar_lea.vmem %s20, 1
    %v1168 = vld [vmem:[%s1167] sm:$0x1]
    %v1169 = vld [vmem:[#allocation7 + $0x2] sm:$0xff]
    %v1170 = vld [vmem:[#allocation7 + $0xa] sm:$0xff]
    %v1171 = vld [vmem:[#allocation7 + $0x12] sm:$0xff]
    %v1172 = vld [vmem:[#allocation7 + $0x1a] sm:$0xff]
    %v1174 = vperm.slane %v1168, 0
    %v1176 = vmul.f32 %v1169, %v1174
    %v1177 = vmul.f32 %v1170, %v1174
    %v1178 = vmul.f32 %v1171, %v1174
    %v1179 = vmul.f32 %v1172, %v1174
    %v1180 = vsel %vm1116, %v1176, 0.0
    %1181 = vadd.xlane.f32.xlu0 %v1180
    %v1182 = vpop.xlane.xlu0 %1181
    %v1183 = vsel %vm1116, %v1177, 0.0
    %1184 = vadd.xlane.f32.xlu0 %v1183
    %v1185 = vpop.xlane.xlu0 %1184
    %v1186 = vsel %vm1116, %v1178, 0.0
    %1187 = vadd.xlane.f32.xlu0 %v1186
    %v1188 = vpop.xlane.xlu0 %1187
    %v1189 = vsel %vm1116, %v1179, 0.0
    %1190 = vadd.xlane.f32.xlu0 %v1189
    %v1191 = vpop.xlane.xlu0 %1190
    %v1192 = vadd.f32 %v1163, %v1182
    %v1193 = vadd.f32 %v1164, %v1185
    %v1194 = vadd.f32 %v1165, %v1188
    %v1195 = vadd.f32 %v1166, %v1191
    %s1196 = scalar_lea.vmem %s20, 2
    %v1197 = vld [vmem:[%s1196] sm:$0x1]
    %v1198 = vld [vmem:[#allocation7] sm:$0xff]
    %v1199 = vld [vmem:[#allocation7 + $0x8] sm:$0xff]
    %v1200 = vld [vmem:[#allocation7 + $0x10] sm:$0xff]
    %v1201 = vld [vmem:[#allocation7 + $0x18] sm:$0xff]
    %v1203 = vperm.slane %v1197, 0
    %v1205 = vmul.f32 %v1198, %v1203
    %v1206 = vmul.f32 %v1199, %v1203
    %v1207 = vmul.f32 %v1200, %v1203
    %v1208 = vmul.f32 %v1201, %v1203
    %v1209 = vsel %vm1116, %v1205, 0.0
    %1210 = vadd.xlane.f32.xlu0 %v1209
    %v1211 = vpop.xlane.xlu0 %1210
    %v1212 = vsel %vm1116, %v1206, 0.0
    %1213 = vadd.xlane.f32.xlu0 %v1212
    %v1214 = vpop.xlane.xlu0 %1213
    %v1215 = vsel %vm1116, %v1207, 0.0
    %1216 = vadd.xlane.f32.xlu0 %v1215
    %v1217 = vpop.xlane.xlu0 %1216
    %v1218 = vsel %vm1116, %v1208, 0.0
    %1219 = vadd.xlane.f32.xlu0 %v1218
    %v1220 = vpop.xlane.xlu0 %1219
    %v1221 = vadd.f32 %v1192, %v1211
    %v1222 = vadd.f32 %v1193, %v1214
    %v1223 = vadd.f32 %v1194, %v1217
    %v1224 = vadd.f32 %v1195, %v1220
    %vm1225 = vcmask 7168
    %1226 = vst.msk [vmem:[%s22] sm:$0xff] %vm1225, %v1221
    %1227 = vst.msk [vmem:[%s22 + $0x8] sm:$0xff] %vm1225, %v1222
    %1228 = vst.msk [vmem:[%s22 + $0x10] sm:$0xff] %vm1225, %v1223
    %1229 = vst.msk [vmem:[%s22 + $0x18] sm:$0xff] %vm1225, %v1224
    // Predicated region
    $region90: #{forward.1} parent=1 // pred_check
      _
    $region91: #{forward.1} parent=1 // pred_check_branch
      %1231 = sbr.rel (0) target = $region93
    $region92: #{forward.1} parent=1 // pred_region
      _
    $region93: #{forward.1} parent=1 // pred_fallthru
      _
    // Predicated region
    $region94: #{forward.1} parent=1 // pred_check
      _
    $region95: #{forward.1} parent=1 // pred_check_branch
      %1233 = sbr.rel (0) target = $region97
    $region96: #{forward.1} parent=1 // pred_region
      %1235 = vsyncadd [#allocation10], 0
      %s1237 = sshll.u32 [#allocation9], 4
      %s1238 = int_to_ptr.vmem [resolvable:$true] %s1237
      %s1239 = sshll.u32 %s23, 4
      %s1240 = int_to_ptr.hbm [resolvable:$true] %s1239
      %1242 = dma.vmem_to_hbm [thread:$0]  %s1238, 64, %s1240, [#allocation10]
    $region97: #{forward.1} parent=1 // pred_fallthru
      _
    // Predicated region
    $region98: #{forward.1} parent=1 // pred_check
      _
    $region99: #{forward.1} parent=1 // pred_check_branch
      %1244 = sbr.rel (0) target = $region101
    $region100: #{forward.1} parent=1 // pred_region
      %1246 = vsyncadd [#allocation12], 0
      %s1248 = sshll.u32 [#allocation11], 4
      %s1249 = int_to_ptr.vmem [resolvable:$true] %s1248
      %s1250 = sshll.u32 %s24, 4
      %s1251 = int_to_ptr.hbm [resolvable:$true] %s1250
      %1253 = dma.vmem_to_hbm [thread:$0]  %s1249, 32, %s1251, [#allocation12]
    $region101: #{forward.1} parent=1 // pred_fallthru
      _
    // Predicated region
    $region102: #{forward.1} parent=1 // pred_check
      _
    $region103: #{forward.1} parent=1 // pred_check_branch
      %1255 = sbr.rel (0) target = $region105
    $region104: #{forward.1} parent=1 // pred_region
      %1257 = vsyncadd [#allocation12], 0
      %s1259 = sshll.u32 [#allocation13], 4
      %s1260 = int_to_ptr.vmem [resolvable:$true] %s1259
      %s1261 = sshll.u32 %s25, 4
      %s1262 = int_to_ptr.hbm [resolvable:$true] %s1261
      %1264 = dma.vmem_to_hbm [thread:$0]  %s1260, 32, %s1262, [#allocation12]
    $region105: #{forward.1} parent=1 // pred_fallthru
      _
    // Predicated region
    $region106: #{forward.1} parent=1 // pred_check
      _
    $region107: #{forward.1} parent=1 // pred_check_branch
      %1266 = sbr.rel (0) target = $region109
    $region108: #{forward.1} parent=1 // pred_region
      _
    $region109: #{forward.1} parent=1 // pred_fallthru
      _
    // Predicated region
    $region110: #{forward.1} parent=1 // pred_check
      _
    $region111: #{forward.1} parent=1 // pred_check_branch
      %1268 = sbr.rel (0) target = $region113
    $region112: #{forward.1} parent=1 // pred_region
      %1270 = dma.done [#allocation10], 64
    $region113: #{forward.1} parent=1 // pred_fallthru
      _
    // Predicated region
    $region114: #{forward.1} parent=1 // pred_check
      _
    $region115: #{forward.1} parent=1 // pred_check_branch
      %1272 = sbr.rel (0) target = $region117
    $region116: #{forward.1} parent=1 // pred_region
      %1274 = dma.done [#allocation12], 32
    $region117: #{forward.1} parent=1 // pred_fallthru
      _
    // Predicated region
    $region118: #{forward.1} parent=1 // pred_check
      _
    $region119: #{forward.1} parent=1 // pred_check_branch
      %1276 = sbr.rel (0) target = $region121
    $region120: #{forward.1} parent=1 // pred_region
      %1278 = dma.done [#allocation12], 32
    $region121: #{forward.1} parent=1 // pred_fallthru
      _
    %1279 = vsyncpa [#allocation10], 1
    %1280 = vsyncpa [#allocation12], 1

</llo_original>
